<compile_context>
chip_gen: v6e
topology: v6e:2x2x1
jax: 0.10.0
libtpu: 0.0.40
codegen_flags: <defaults>
</compile_context>

<pallas_src>
from functools import partial

import jax
import jax.numpy as jnp
from jax.experimental import pallas as pl
from jax.experimental.pallas import tpu as pltpu

INV_SQRT2 = 0.7071067811865476


def _pick_tile(n, candidates=(512, 256, 128)):
    """Largest candidate that evenly divides n; otherwise the full extent."""
    for t in candidates:
        if n > t and n % t == 0:
            return t
    return n


def _vmem_limit_bytes(N, TQ, TH, C, hidden):
    """Generation-aware VMEM limit with headroom for Mosaic internal scratch."""
    w_bytes = 2 * (4 * C * C + 2 * C * hidden) * 2            # bf16 weights, 2 bufs
    p_bytes = 4 * (6 * C + hidden) * 2 * 2                     # small f32 params
    x_bytes = 4 * N * C * 2                                    # (N, C) f32 x block, 2 bufs
    o_bytes = 4 * TQ * C * 2                                   # output tile, 2 bufs
    scr = 3 * 2 * N * C + 2 * TQ * C                           # xn/k/v + attn scratch
    live = 4 * (4 * TQ * N + 6 * TQ * C + 2 * TQ * TH + N * C)  # s/p, LN, h1/h2, ...
    est = w_bytes + p_bytes + x_bytes + o_bytes + scr + live
    try:
        cap = int(pltpu.get_tpu_info().vmem_capacity_bytes)
    except Exception:  # pragma: no cover - conservative fallback off-TPU
        cap = 64 << 20
    ceiling = max(min(cap - (8 << 20), 110 << 20), 32 << 20)
    return int(min(max(int(1.5 * est) + (4 << 20), 32 << 20), ceiling))


def block_kernel(x_ref, g1_ref, b1_ref,
                 wq_ref, wk_ref, wv_ref, wproj_ref, bproj_ref,
                 g2_ref, b2_ref, w1_ref, bf1_ref, w2_ref, bf2_ref,
                 o_ref,
                 xn_sc, k_sc, v_sc, attn_sc,
                 *, num_heads, eps, hidden_chunk, tq):
    f32, bf16 = jnp.float32, jnp.bfloat16
    N, C = x_ref.shape
    hd = C // num_heads
    scale = hd ** -0.5
    qi = pl.program_id(1)

    def layernorm(y, g, b):
        mu = jnp.mean(y, axis=-1, keepdims=True)
        var = jnp.mean(jnp.square(y - mu), axis=-1, keepdims=True)
        return (y - mu) * jax.lax.rsqrt(var + eps) * g + b

    g1, b1 = g1_ref[...], b1_ref[...]

    # ---- once per batch row: LN1 of full token block, K / V projections ----
    @pl.when(qi == 0)
    def _():
        xn = layernorm(x_ref[...].astype(f32), g1, b1).astype(bf16)     # (N, C)
        xn_sc[...] = xn
        k_sc[...] = jnp.dot(xn, wk_ref[...], preferred_element_type=f32).astype(bf16)
        v_sc[...] = jnp.dot(xn, wv_ref[...], preferred_element_type=f32).astype(bf16)

    # ---- per query tile ----
    row0 = pl.multiple_of(qi * tq, tq)
    xq = x_ref[pl.ds(row0, tq), :].astype(f32)       # (TQ, C) residual rows
    xqn = xn_sc[pl.ds(row0, tq), :]                  # (TQ, C) bf16 LN1 rows

    # qkv_bias = False; fold 1/sqrt(hd) into q.
    q = (jnp.dot(xqn, wq_ref[...], preferred_element_type=f32) * scale).astype(bf16)
    k_all = k_sc[...]
    v_all = v_sc[...]

    # per-head attention; head outputs go into a lane-sliced VMEM scratch.
    trans_b = (((1,), (1,)), ((), ()))               # q @ k^T (contract head_dim)
    for h in range(num_heads):                       # static unroll over heads
        sl = slice(h * hd, (h + 1) * hd)
        s = jax.lax.dot_general(q[:, sl], k_all[:, sl], trans_b,
                                preferred_element_type=f32)            # (TQ, N) f32
        s = s - jnp.max(s, axis=-1, keepdims=True)
        p = jnp.exp(s)
        p = p * pl.reciprocal(jnp.sum(p, axis=-1, keepdims=True), approx=True)
        oh = jnp.dot(p.astype(bf16), v_all[:, sl], preferred_element_type=f32)
        attn_sc[:, sl] = oh.astype(bf16)

    attn_out = (jnp.dot(attn_sc[...], wproj_ref[...], preferred_element_type=f32)
                + bproj_ref[...])
    x1 = xq + attn_out                                                  # residual 1

    # ---- LayerNorm 2 ----
    x1n = layernorm(x1, g2_ref[...], b2_ref[...]).astype(bf16)

    # ---- MLP tiled over the hidden dim: fc1 chunk -> exact erf-GELU -> fc2 accum ----
    hidden = w1_ref.shape[1]
    h2 = jnp.zeros((tq, C), f32)
    for c0 in range(0, hidden, hidden_chunk):
        c1 = c0 + hidden_chunk
        h1 = (jnp.dot(x1n, w1_ref[:, c0:c1], preferred_element_type=f32)
              + bf1_ref[:, c0:c1])
        h1 = 0.5 * h1 * (1.0 + jax.lax.erf(h1 * INV_SQRT2))             # exact GELU, f32
        h2 = h2 + jnp.dot(h1.astype(bf16), w2_ref[c0:c1, :],
                          preferred_element_type=f32)

    o_ref[...] = (x1 + h2 + bf2_ref[...]).astype(o_ref.dtype)           # residual 2


def transformer_block(x, p, num_heads, *, eps=1e-5):
    B, N, C = x.shape
    hidden = p["w1"].shape[1]

    TQ = _pick_tile(N)                                  # query-token tile
    n_q = N // TQ
    TH = _pick_tile(hidden, (1024, 512, 256, 128))      # MLP hidden chunk

    bf16 = jnp.bfloat16
    wq = p["wqkv"][:, :C].astype(bf16)
    wk = p["wqkv"][:, C:2 * C].astype(bf16)
    wv = p["wqkv"][:, 2 * C:].astype(bf16)
    wproj = p["wproj"].astype(bf16)
    w1 = p["w1"].astype(bf16)
    w2 = p["w2"].astype(bf16)

    const2d = lambda shape: pl.BlockSpec(shape, lambda b, qi: (0, 0))

    return pl.pallas_call(
        partial(block_kernel, num_heads=num_heads, eps=eps, hidden_chunk=TH, tq=TQ),
        out_shape=jax.ShapeDtypeStruct((B, N, C), x.dtype),
        grid=(B, n_q),
        in_specs=[
            pl.BlockSpec((None, N, C), lambda b, qi: (b, 0, 0)),   # x, full token block
            const2d((1, C)), const2d((1, C)),                      # norm1 gamma / beta
            const2d((C, C)), const2d((C, C)), const2d((C, C)),     # wq / wk / wv
            const2d((C, C)), const2d((1, C)),                      # proj weight / bias
            const2d((1, C)), const2d((1, C)),                      # norm2 gamma / beta
            const2d((C, hidden)), const2d((1, hidden)),            # fc1 weight / bias
            const2d((hidden, C)), const2d((1, C)),                 # fc2 weight / bias
        ],
        out_specs=pl.BlockSpec((None, TQ, C), lambda b, qi: (b, qi, 0)),
        scratch_shapes=[
            pltpu.VMEM((N, C), jnp.bfloat16),    # LN1(x) for the whole row block
            pltpu.VMEM((N, C), jnp.bfloat16),    # K
            pltpu.VMEM((N, C), jnp.bfloat16),    # V
            pltpu.VMEM((TQ, C), jnp.bfloat16),   # per-head attention output
        ],
        compiler_params=pltpu.CompilerParams(
            # qi axis must be sequential: K/V scratch is filled at qi == 0 and reused.
            dimension_semantics=("parallel", "arbitrary"),
            vmem_limit_bytes=_vmem_limit_bytes(N, TQ, TH, C, hidden)),
    )(x, p["g1"], p["b1"], wq, wk, wv, wproj, p["bproj"],
      p["g2"], p["b2"], w1, p["bf1"], w2, p["bf2"])


def reference(x, p, num_heads):
    """Pure-JAX f32 reference of Block.forward (eval mode)."""
    def ln(y, g, b):
        mu = y.mean(-1, keepdims=True)
        var = ((y - mu) ** 2).mean(-1, keepdims=True)
        return (y - mu) / jnp.sqrt(var + 1e-5) * g + b

    B, N, C = x.shape
    hd = C // num_heads
    xn = ln(x, p["g1"][0], p["b1"][0])
    qkv = (xn @ p["wqkv"]).reshape(B, N, 3, num_heads, hd).transpose(2, 0, 3, 1, 4)
    q, k, v = qkv[0], qkv[1], qkv[2]
    attn = jnp.einsum("bhqd,bhkd->bhqk", q, k) * hd ** -0.5
    attn = jax.nn.softmax(attn, axis=-1)
    o = jnp.einsum("bhqk,bhkd->bhqd", attn, v).transpose(0, 2, 1, 3).reshape(B, N, C)
    o = o @ p["wproj"] + p["bproj"][0]
    x1 = x + o
    x1n = ln(x1, p["g2"][0], p["b2"][0])
    h = x1n @ p["w1"] + p["bf1"][0]
    h = jax.nn.gelu(h, approximate=False)
    h = h @ p["w2"] + p["bf2"][0]
    return x1 + h


def init_params(key, dim, mlp_ratio=4.0):
    hidden = int(dim * mlp_ratio)
    ks = jax.random.split(key, 12)
    s = 0.02
    return {
        "g1":    1.0 + s * jax.random.normal(ks[0], (1, dim), jnp.float32),
        "b1":          s * jax.random.normal(ks[1], (1, dim), jnp.float32),
        "wqkv":        s * jax.random.normal(ks[2], (dim, 3 * dim), jnp.float32),
        "wproj":       s * jax.random.normal(ks[3], (dim, dim), jnp.float32),
        "bproj":       s * jax.random.normal(ks[4], (1, dim), jnp.float32),
        "g2":    1.0 + s * jax.random.normal(ks[5], (1, dim), jnp.float32),
        "b2":          s * jax.random.normal(ks[6], (1, dim), jnp.float32),
        "w1":          s * jax.random.normal(ks[7], (dim, hidden), jnp.float32),
        "bf1":         s * jax.random.normal(ks[8], (1, hidden), jnp.float32),
        "w2":          s * jax.random.normal(ks[9], (hidden, dim), jnp.float32),
        "bf2":         s * jax.random.normal(ks[10], (1, dim), jnp.float32),
    }


if __name__ == "__main__":
    B, N, C = 2, 8, 32
    num_heads = 4

    key = jax.random.PRNGKey(0)
    kx, kp = jax.random.split(key)
    x = jax.random.normal(kx, (B, N, C), jnp.float32)
    params = init_params(kp, C, mlp_ratio=4.0)

    out = jax.block_until_ready(transformer_block(x, params, num_heads))

    ref = reference(x, params, num_heads)
    assert out.shape == (B, N, C)
    err = jnp.max(jnp.abs(out - ref))
    # bf16 matmul operands + approx reciprocal loosen the tolerance vs the f32 reference.
    assert jnp.allclose(out, ref, atol=1e-2, rtol=1e-2), f"max abs err = {err}"

    print("KERNEL_OK")
</pallas_src>

<mosaic_0001>
module attributes {stable_mosaic.version = 11 : i64} {
  func.func @block_kernel(%arg0: i32, %arg1: i32, %arg2: memref<1x8x32xf32, #tpu.memory_space<vmem>>, %arg3: memref<1x32xf32, #tpu.memory_space<vmem>>, %arg4: memref<1x32xf32, #tpu.memory_space<vmem>>, %arg5: memref<32x32xbf16, #tpu.memory_space<vmem>>, %arg6: memref<32x32xbf16, #tpu.memory_space<vmem>>, %arg7: memref<32x32xbf16, #tpu.memory_space<vmem>>, %arg8: memref<32x32xbf16, #tpu.memory_space<vmem>>, %arg9: memref<1x32xf32, #tpu.memory_space<vmem>>, %arg10: memref<1x32xf32, #tpu.memory_space<vmem>>, %arg11: memref<1x32xf32, #tpu.memory_space<vmem>>, %arg12: memref<32x128xbf16, #tpu.memory_space<vmem>>, %arg13: memref<1x128xf32, #tpu.memory_space<vmem>>, %arg14: memref<128x32xbf16, #tpu.memory_space<vmem>>, %arg15: memref<1x32xf32, #tpu.memory_space<vmem>>, %arg16: memref<1x8x32xf32, #tpu.memory_space<vmem>>, %arg17: memref<8x32xbf16, #tpu.memory_space<vmem>>, %arg18: memref<8x32xbf16, #tpu.memory_space<vmem>>, %arg19: memref<8x32xbf16, #tpu.memory_space<vmem>>, %arg20: memref<8x32xbf16, #tpu.memory_space<vmem>>) attributes {dimension_semantics = [#tpu.dimension_semantics<parallel>, #tpu.dimension_semantics<arbitrary>], iteration_bounds = array<i64: 2, 1>, scalar_prefetch = 0 : i64, scratch_operands = 4 : i64, tpu.core_type = #tpu.core_type<tc>, window_params = [{transform_indices = @transform_0, window_bounds = array<i64: 1, 8, 32>}, {pipeline_mode = #tpu.pipeline_mode<synchronous>, transform_indices = @transform_1, window_bounds = array<i64: 1, 32>}, {pipeline_mode = #tpu.pipeline_mode<synchronous>, transform_indices = @transform_2, window_bounds = array<i64: 1, 32>}, {pipeline_mode = #tpu.pipeline_mode<synchronous>, transform_indices = @transform_3, window_bounds = array<i64: 32, 32>}, {pipeline_mode = #tpu.pipeline_mode<synchronous>, transform_indices = @transform_4, window_bounds = array<i64: 32, 32>}, {pipeline_mode = #tpu.pipeline_mode<synchronous>, transform_indices = @transform_5, window_bounds = array<i64: 32, 32>}, {pipeline_mode = #tpu.pipeline_mode<synchronous>, transform_indices = @transform_6, window_bounds = array<i64: 32, 32>}, {pipeline_mode = #tpu.pipeline_mode<synchronous>, transform_indices = @transform_7, window_bounds = array<i64: 1, 32>}, {pipeline_mode = #tpu.pipeline_mode<synchronous>, transform_indices = @transform_8, window_bounds = array<i64: 1, 32>}, {pipeline_mode = #tpu.pipeline_mode<synchronous>, transform_indices = @transform_9, window_bounds = array<i64: 1, 32>}, {pipeline_mode = #tpu.pipeline_mode<synchronous>, transform_indices = @transform_10, window_bounds = array<i64: 32, 128>}, {pipeline_mode = #tpu.pipeline_mode<synchronous>, transform_indices = @transform_11, window_bounds = array<i64: 1, 128>}, {pipeline_mode = #tpu.pipeline_mode<synchronous>, transform_indices = @transform_12, window_bounds = array<i64: 128, 32>}, {pipeline_mode = #tpu.pipeline_mode<synchronous>, transform_indices = @transform_13, window_bounds = array<i64: 1, 32>}, {transform_indices = @transform_14, window_bounds = array<i64: 1, 8, 32>}]} {
    %c0 = arith.constant 0 : index
    %c0_0 = arith.constant 0 : index
    %0 = vector.load %arg3[%c0, %c0_0] : memref<1x32xf32, #tpu.memory_space<vmem>>, vector<1x32xf32>
    %c0_1 = arith.constant 0 : index
    %c0_2 = arith.constant 0 : index
    %1 = vector.load %arg4[%c0_1, %c0_2] : memref<1x32xf32, #tpu.memory_space<vmem>>, vector<1x32xf32>
    %c0_i32 = arith.constant 0 : i32
    %2 = arith.cmpi eq, %arg1, %c0_i32 : i32
    %3 = arith.extui %2 : i1 to i32
    %c0_i32_3 = arith.constant 0 : i32
    %4 = arith.cmpi ne, %3, %c0_i32_3 : i32
    scf.if %4 {
      %c0_68 = arith.constant 0 : index
      %c0_69 = arith.constant 0 : index
      %c0_70 = arith.constant 0 : index
      %148 = vector.load %arg2[%c0_68, %c0_69, %c0_70] : memref<1x8x32xf32, #tpu.memory_space<vmem>>, vector<1x8x32xf32>
      %149 = vector.shape_cast %148 : vector<1x8x32xf32> to vector<8x32xf32>
      %cst_71 = arith.constant dense<0.000000e+00> : vector<8xf32>
      %150 = vector.multi_reduction <add>, %149, %cst_71 [1] : vector<8x32xf32> to vector<8xf32>
      %151 = vector.shape_cast %150 : vector<8xf32> to vector<8x1xf32>
      %cst_72 = arith.constant 3.200000e+01 : f32
      %152 = vector.broadcast %cst_72 : f32 to vector<8x1xf32>
      %153 = arith.divf %151, %152 : vector<8x1xf32>
      %154 = vector.broadcast %153 : vector<8x1xf32> to vector<8x32xf32>
      %155 = arith.subf %149, %154 : vector<8x32xf32>
      %156 = arith.mulf %155, %155 : vector<8x32xf32>
      %cst_73 = arith.constant dense<0.000000e+00> : vector<8xf32>
      %157 = vector.multi_reduction <add>, %156, %cst_73 [1] : vector<8x32xf32> to vector<8xf32>
      %158 = vector.shape_cast %157 : vector<8xf32> to vector<8x1xf32>
      %cst_74 = arith.constant 3.200000e+01 : f32
      %159 = vector.broadcast %cst_74 : f32 to vector<8x1xf32>
      %160 = arith.divf %158, %159 : vector<8x1xf32>
      %161 = vector.broadcast %153 : vector<8x1xf32> to vector<8x32xf32>
      %162 = arith.subf %149, %161 : vector<8x32xf32>
      %cst_75 = arith.constant 9.99999974E-6 : f32
      %163 = vector.broadcast %cst_75 : f32 to vector<8x1xf32>
      %164 = arith.addf %160, %163 : vector<8x1xf32>
      %165 = math.rsqrt %164 : vector<8x1xf32>
      %166 = vector.broadcast %165 : vector<8x1xf32> to vector<8x32xf32>
      %167 = arith.mulf %162, %166 : vector<8x32xf32>
      %168 = vector.broadcast %0 : vector<1x32xf32> to vector<8x32xf32>
      %169 = arith.mulf %167, %168 : vector<8x32xf32>
      %170 = vector.broadcast %1 : vector<1x32xf32> to vector<8x32xf32>
      %171 = arith.addf %169, %170 : vector<8x32xf32>
      %172 = arith.truncf %171 : vector<8x32xf32> to vector<8x32xbf16>
      %c0_76 = arith.constant 0 : index
      %c0_77 = arith.constant 0 : index
      %173 = vector.load %arg17[%c0_76, %c0_77] : memref<8x32xbf16, #tpu.memory_space<vmem>>, vector<8x32xbf16>
      tpu.vector_store %arg17[%c0_76, %c0_77], %172 {strides = array<i32>} : memref<8x32xbf16, #tpu.memory_space<vmem>>, vector<8x32xbf16>,
      %c0_78 = arith.constant 0 : index
      %c0_79 = arith.constant 0 : index
      %174 = vector.load %arg6[%c0_78, %c0_79] : memref<32x32xbf16, #tpu.memory_space<vmem>>, vector<32x32xbf16>
      %cst_80 = arith.constant dense<0.000000e+00> : vector<8x32xf32>
      %175 = tpu.matmul %172, %174, %cst_80 {dimension_numbers = #tpu.dot_dimension_numbers<[1], [0], [0], [1], [0, 0, 1, 1], [], []>} : vector<8x32xbf16>, vector<32x32xbf16>, vector<8x32xf32> -> vector<8x32xf32>
      %176 = arith.truncf %175 : vector<8x32xf32> to vector<8x32xbf16>
      %c0_81 = arith.constant 0 : index
      %c0_82 = arith.constant 0 : index
      %177 = vector.load %arg18[%c0_81, %c0_82] : memref<8x32xbf16, #tpu.memory_space<vmem>>, vector<8x32xbf16>
      tpu.vector_store %arg18[%c0_81, %c0_82], %176 {strides = array<i32>} : memref<8x32xbf16, #tpu.memory_space<vmem>>, vector<8x32xbf16>,
      %c0_83 = arith.constant 0 : index
      %c0_84 = arith.constant 0 : index
      %178 = vector.load %arg7[%c0_83, %c0_84] : memref<32x32xbf16, #tpu.memory_space<vmem>>, vector<32x32xbf16>
      %cst_85 = arith.constant dense<0.000000e+00> : vector<8x32xf32>
      %179 = tpu.matmul %172, %178, %cst_85 {dimension_numbers = #tpu.dot_dimension_numbers<[1], [0], [0], [1], [0, 0, 1, 1], [], []>} : vector<8x32xbf16>, vector<32x32xbf16>, vector<8x32xf32> -> vector<8x32xf32>
      %180 = arith.truncf %179 : vector<8x32xf32> to vector<8x32xbf16>
      %c0_86 = arith.constant 0 : index
      %c0_87 = arith.constant 0 : index
      %181 = vector.load %arg19[%c0_86, %c0_87] : memref<8x32xbf16, #tpu.memory_space<vmem>>, vector<8x32xbf16>
      tpu.vector_store %arg19[%c0_86, %c0_87], %180 {strides = array<i32>} : memref<8x32xbf16, #tpu.memory_space<vmem>>, vector<8x32xbf16>,
    } else {
    }
    %c8_i32 = arith.constant 8 : i32
    %5 = arith.muli %arg1, %c8_i32 : i32
    %6 = tpu.assume_multiple %5, 8 : i32
    %c0_4 = arith.constant 0 : index
    %7 = arith.index_cast %6 : i32 to index
    %c0_5 = arith.constant 0 : index
    %8 = vector.load %arg2[%c0_4, %7, %c0_5] : memref<1x8x32xf32, #tpu.memory_space<vmem>>, vector<1x8x32xf32>
    %9 = vector.shape_cast %8 : vector<1x8x32xf32> to vector<8x32xf32>
    %10 = arith.index_cast %6 : i32 to index
    %c0_6 = arith.constant 0 : index
    %11 = vector.load %arg17[%10, %c0_6] : memref<8x32xbf16, #tpu.memory_space<vmem>>, vector<8x32xbf16>
    %c0_7 = arith.constant 0 : index
    %c0_8 = arith.constant 0 : index
    %12 = vector.load %arg5[%c0_7, %c0_8] : memref<32x32xbf16, #tpu.memory_space<vmem>>, vector<32x32xbf16>
    %cst = arith.constant dense<0.000000e+00> : vector<8x32xf32>
    %13 = tpu.matmul %11, %12, %cst {dimension_numbers = #tpu.dot_dimension_numbers<[1], [0], [0], [1], [0, 0, 1, 1], [], []>} : vector<8x32xbf16>, vector<32x32xbf16>, vector<8x32xf32> -> vector<8x32xf32>
    %cst_9 = arith.constant 0.353553385 : f32
    %14 = vector.broadcast %cst_9 : f32 to vector<8x32xf32>
    %15 = arith.mulf %13, %14 : vector<8x32xf32>
    %16 = arith.truncf %15 : vector<8x32xf32> to vector<8x32xbf16>
    %c0_10 = arith.constant 0 : index
    %c0_11 = arith.constant 0 : index
    %17 = vector.load %arg18[%c0_10, %c0_11] : memref<8x32xbf16, #tpu.memory_space<vmem>>, vector<8x32xbf16>
    %c0_12 = arith.constant 0 : index
    %c0_13 = arith.constant 0 : index
    %18 = vector.load %arg19[%c0_12, %c0_13] : memref<8x32xbf16, #tpu.memory_space<vmem>>, vector<8x32xbf16>
    %19 = vector.extract_strided_slice %16 {offsets = [0, 0], sizes = [8, 8], strides = [1, 1]} : vector<8x32xbf16> to vector<8x8xbf16>
    %20 = vector.extract_strided_slice %17 {offsets = [0, 0], sizes = [8, 8], strides = [1, 1]} : vector<8x32xbf16> to vector<8x8xbf16>
    %cst_14 = arith.constant dense<0.000000e+00> : vector<8x8xf32>
    %21 = tpu.matmul %19, %20, %cst_14 {dimension_numbers = #tpu.dot_dimension_numbers<[1], [1], [0], [0], [0, 0, 1, 0], [], []>} : vector<8x8xbf16>, vector<8x8xbf16>, vector<8x8xf32> -> vector<8x8xf32>
    %cst_15 = arith.constant dense<0xFF800000> : vector<8xf32>
    %22 = vector.multi_reduction <maximumf>, %21, %cst_15 [1] : vector<8x8xf32> to vector<8xf32>
    %23 = vector.shape_cast %22 : vector<8xf32> to vector<8x1xf32>
    %24 = vector.broadcast %23 : vector<8x1xf32> to vector<8x8xf32>
    %25 = arith.subf %21, %24 : vector<8x8xf32>
    %26 = math.exp %25 : vector<8x8xf32>
    %cst_16 = arith.constant dense<0.000000e+00> : vector<8xf32>
    %27 = vector.multi_reduction <add>, %26, %cst_16 [1] : vector<8x8xf32> to vector<8xf32>
    %28 = vector.shape_cast %27 : vector<8xf32> to vector<8x1xf32>
    %29 = tpu.reciprocal %28 {approx = true} : vector<8x1xf32> -> vector<8x1xf32>
    %30 = vector.broadcast %29 : vector<8x1xf32> to vector<8x8xf32>
    %31 = arith.mulf %26, %30 : vector<8x8xf32>
    %32 = arith.truncf %31 : vector<8x8xf32> to vector<8x8xbf16>
    %33 = vector.extract_strided_slice %18 {offsets = [0, 0], sizes = [8, 8], strides = [1, 1]} : vector<8x32xbf16> to vector<8x8xbf16>
    %cst_17 = arith.constant dense<0.000000e+00> : vector<8x8xf32>
    %34 = tpu.matmul %32, %33, %cst_17 {dimension_numbers = #tpu.dot_dimension_numbers<[1], [0], [0], [1], [0, 0, 1, 1], [], []>} : vector<8x8xbf16>, vector<8x8xbf16>, vector<8x8xf32> -> vector<8x8xf32>
    %35 = arith.truncf %34 : vector<8x8xf32> to vector<8x8xbf16>
    %c0_18 = arith.constant 0 : index
    %c0_19 = arith.constant 0 : index
    %36 = vector.load %arg20[%c0_18, %c0_19] : memref<8x32xbf16, #tpu.memory_space<vmem>>, vector<8x8xbf16>
    tpu.vector_store %arg20[%c0_18, %c0_19], %35 {strides = array<i32>} : memref<8x32xbf16, #tpu.memory_space<vmem>>, vector<8x8xbf16>,
    %37 = vector.extract_strided_slice %16 {offsets = [0, 8], sizes = [8, 8], strides = [1, 1]} : vector<8x32xbf16> to vector<8x8xbf16>
    %38 = vector.extract_strided_slice %17 {offsets = [0, 8], sizes = [8, 8], strides = [1, 1]} : vector<8x32xbf16> to vector<8x8xbf16>
    %cst_20 = arith.constant dense<0.000000e+00> : vector<8x8xf32>
    %39 = tpu.matmul %37, %38, %cst_20 {dimension_numbers = #tpu.dot_dimension_numbers<[1], [1], [0], [0], [0, 0, 1, 0], [], []>} : vector<8x8xbf16>, vector<8x8xbf16>, vector<8x8xf32> -> vector<8x8xf32>
    %cst_21 = arith.constant dense<0xFF800000> : vector<8xf32>
    %40 = vector.multi_reduction <maximumf>, %39, %cst_21 [1] : vector<8x8xf32> to vector<8xf32>
    %41 = vector.shape_cast %40 : vector<8xf32> to vector<8x1xf32>
    %42 = vector.broadcast %41 : vector<8x1xf32> to vector<8x8xf32>
    %43 = arith.subf %39, %42 : vector<8x8xf32>
    %44 = math.exp %43 : vector<8x8xf32>
    %cst_22 = arith.constant dense<0.000000e+00> : vector<8xf32>
    %45 = vector.multi_reduction <add>, %44, %cst_22 [1] : vector<8x8xf32> to vector<8xf32>
    %46 = vector.shape_cast %45 : vector<8xf32> to vector<8x1xf32>
    %47 = tpu.reciprocal %46 {approx = true} : vector<8x1xf32> -> vector<8x1xf32>
    %48 = vector.broadcast %47 : vector<8x1xf32> to vector<8x8xf32>
    %49 = arith.mulf %44, %48 : vector<8x8xf32>
    %50 = arith.truncf %49 : vector<8x8xf32> to vector<8x8xbf16>
    %51 = vector.extract_strided_slice %18 {offsets = [0, 8], sizes = [8, 8], strides = [1, 1]} : vector<8x32xbf16> to vector<8x8xbf16>
    %cst_23 = arith.constant dense<0.000000e+00> : vector<8x8xf32>
    %52 = tpu.matmul %50, %51, %cst_23 {dimension_numbers = #tpu.dot_dimension_numbers<[1], [0], [0], [1], [0, 0, 1, 1], [], []>} : vector<8x8xbf16>, vector<8x8xbf16>, vector<8x8xf32> -> vector<8x8xf32>
    %53 = arith.truncf %52 : vector<8x8xf32> to vector<8x8xbf16>
    %c0_24 = arith.constant 0 : index
    %c8 = arith.constant 8 : index
    %54 = vector.load %arg20[%c0_24, %c8] : memref<8x32xbf16, #tpu.memory_space<vmem>>, vector<8x8xbf16>
    tpu.vector_store %arg20[%c0_24, %c8], %53 {strides = array<i32>} : memref<8x32xbf16, #tpu.memory_space<vmem>>, vector<8x8xbf16>,
    %55 = vector.extract_strided_slice %16 {offsets = [0, 16], sizes = [8, 8], strides = [1, 1]} : vector<8x32xbf16> to vector<8x8xbf16>
    %56 = vector.extract_strided_slice %17 {offsets = [0, 16], sizes = [8, 8], strides = [1, 1]} : vector<8x32xbf16> to vector<8x8xbf16>
    %cst_25 = arith.constant dense<0.000000e+00> : vector<8x8xf32>
    %57 = tpu.matmul %55, %56, %cst_25 {dimension_numbers = #tpu.dot_dimension_numbers<[1], [1], [0], [0], [0, 0, 1, 0], [], []>} : vector<8x8xbf16>, vector<8x8xbf16>, vector<8x8xf32> -> vector<8x8xf32>
    %cst_26 = arith.constant dense<0xFF800000> : vector<8xf32>
    %58 = vector.multi_reduction <maximumf>, %57, %cst_26 [1] : vector<8x8xf32> to vector<8xf32>
    %59 = vector.shape_cast %58 : vector<8xf32> to vector<8x1xf32>
    %60 = vector.broadcast %59 : vector<8x1xf32> to vector<8x8xf32>
    %61 = arith.subf %57, %60 : vector<8x8xf32>
    %62 = math.exp %61 : vector<8x8xf32>
    %cst_27 = arith.constant dense<0.000000e+00> : vector<8xf32>
    %63 = vector.multi_reduction <add>, %62, %cst_27 [1] : vector<8x8xf32> to vector<8xf32>
    %64 = vector.shape_cast %63 : vector<8xf32> to vector<8x1xf32>
    %65 = tpu.reciprocal %64 {approx = true} : vector<8x1xf32> -> vector<8x1xf32>
    %66 = vector.broadcast %65 : vector<8x1xf32> to vector<8x8xf32>
    %67 = arith.mulf %62, %66 : vector<8x8xf32>
    %68 = arith.truncf %67 : vector<8x8xf32> to vector<8x8xbf16>
    %69 = vector.extract_strided_slice %18 {offsets = [0, 16], sizes = [8, 8], strides = [1, 1]} : vector<8x32xbf16> to vector<8x8xbf16>
    %cst_28 = arith.constant dense<0.000000e+00> : vector<8x8xf32>
    %70 = tpu.matmul %68, %69, %cst_28 {dimension_numbers = #tpu.dot_dimension_numbers<[1], [0], [0], [1], [0, 0, 1, 1], [], []>} : vector<8x8xbf16>, vector<8x8xbf16>, vector<8x8xf32> -> vector<8x8xf32>
    %71 = arith.truncf %70 : vector<8x8xf32> to vector<8x8xbf16>
    %c0_29 = arith.constant 0 : index
    %c16 = arith.constant 16 : index
    %72 = vector.load %arg20[%c0_29, %c16] : memref<8x32xbf16, #tpu.memory_space<vmem>>, vector<8x8xbf16>
    tpu.vector_store %arg20[%c0_29, %c16], %71 {strides = array<i32>} : memref<8x32xbf16, #tpu.memory_space<vmem>>, vector<8x8xbf16>,
    %73 = vector.extract_strided_slice %16 {offsets = [0, 24], sizes = [8, 8], strides = [1, 1]} : vector<8x32xbf16> to vector<8x8xbf16>
    %74 = vector.extract_strided_slice %17 {offsets = [0, 24], sizes = [8, 8], strides = [1, 1]} : vector<8x32xbf16> to vector<8x8xbf16>
    %cst_30 = arith.constant dense<0.000000e+00> : vector<8x8xf32>
    %75 = tpu.matmul %73, %74, %cst_30 {dimension_numbers = #tpu.dot_dimension_numbers<[1], [1], [0], [0], [0, 0, 1, 0], [], []>} : vector<8x8xbf16>, vector<8x8xbf16>, vector<8x8xf32> -> vector<8x8xf32>
    %cst_31 = arith.constant dense<0xFF800000> : vector<8xf32>
    %76 = vector.multi_reduction <maximumf>, %75, %cst_31 [1] : vector<8x8xf32> to vector<8xf32>
    %77 = vector.shape_cast %76 : vector<8xf32> to vector<8x1xf32>
    %78 = vector.broadcast %77 : vector<8x1xf32> to vector<8x8xf32>
    %79 = arith.subf %75, %78 : vector<8x8xf32>
    %80 = math.exp %79 : vector<8x8xf32>
    %cst_32 = arith.constant dense<0.000000e+00> : vector<8xf32>
    %81 = vector.multi_reduction <add>, %80, %cst_32 [1] : vector<8x8xf32> to vector<8xf32>
    %82 = vector.shape_cast %81 : vector<8xf32> to vector<8x1xf32>
    %83 = tpu.reciprocal %82 {approx = true} : vector<8x1xf32> -> vector<8x1xf32>
    %84 = vector.broadcast %83 : vector<8x1xf32> to vector<8x8xf32>
    %85 = arith.mulf %80, %84 : vector<8x8xf32>
    %86 = arith.truncf %85 : vector<8x8xf32> to vector<8x8xbf16>
    %87 = vector.extract_strided_slice %18 {offsets = [0, 24], sizes = [8, 8], strides = [1, 1]} : vector<8x32xbf16> to vector<8x8xbf16>
    %cst_33 = arith.constant dense<0.000000e+00> : vector<8x8xf32>
    %88 = tpu.matmul %86, %87, %cst_33 {dimension_numbers = #tpu.dot_dimension_numbers<[1], [0], [0], [1], [0, 0, 1, 1], [], []>} : vector<8x8xbf16>, vector<8x8xbf16>, vector<8x8xf32> -> vector<8x8xf32>
    %89 = arith.truncf %88 : vector<8x8xf32> to vector<8x8xbf16>
    %c0_34 = arith.constant 0 : index
    %c24 = arith.constant 24 : index
    %90 = vector.load %arg20[%c0_34, %c24] : memref<8x32xbf16, #tpu.memory_space<vmem>>, vector<8x8xbf16>
    tpu.vector_store %arg20[%c0_34, %c24], %89 {strides = array<i32>} : memref<8x32xbf16, #tpu.memory_space<vmem>>, vector<8x8xbf16>,
    %c0_35 = arith.constant 0 : index
    %c0_36 = arith.constant 0 : index
    %91 = vector.load %arg20[%c0_35, %c0_36] : memref<8x32xbf16, #tpu.memory_space<vmem>>, vector<8x32xbf16>
    %c0_37 = arith.constant 0 : index
    %c0_38 = arith.constant 0 : index
    %92 = vector.load %arg8[%c0_37, %c0_38] : memref<32x32xbf16, #tpu.memory_space<vmem>>, vector<32x32xbf16>
    %cst_39 = arith.constant dense<0.000000e+00> : vector<8x32xf32>
    %93 = tpu.matmul %91, %92, %cst_39 {dimension_numbers = #tpu.dot_dimension_numbers<[1], [0], [0], [1], [0, 0, 1, 1], [], []>} : vector<8x32xbf16>, vector<32x32xbf16>, vector<8x32xf32> -> vector<8x32xf32>
    %c0_40 = arith.constant 0 : index
    %c0_41 = arith.constant 0 : index
    %94 = vector.load %arg9[%c0_40, %c0_41] : memref<1x32xf32, #tpu.memory_space<vmem>>, vector<1x32xf32>
    %95 = vector.broadcast %94 : vector<1x32xf32> to vector<8x32xf32>
    %96 = arith.addf %93, %95 : vector<8x32xf32>
    %97 = arith.addf %9, %96 : vector<8x32xf32>
    %c0_42 = arith.constant 0 : index
    %c0_43 = arith.constant 0 : index
    %98 = vector.load %arg10[%c0_42, %c0_43] : memref<1x32xf32, #tpu.memory_space<vmem>>, vector<1x32xf32>
    %c0_44 = arith.constant 0 : index
    %c0_45 = arith.constant 0 : index
    %99 = vector.load %arg11[%c0_44, %c0_45] : memref<1x32xf32, #tpu.memory_space<vmem>>, vector<1x32xf32>
    %cst_46 = arith.constant dense<0.000000e+00> : vector<8xf32>
    %100 = vector.multi_reduction <add>, %97, %cst_46 [1] : vector<8x32xf32> to vector<8xf32>
    %101 = vector.shape_cast %100 : vector<8xf32> to vector<8x1xf32>
    %cst_47 = arith.constant 3.200000e+01 : f32
    %102 = vector.broadcast %cst_47 : f32 to vector<8x1xf32>
    %103 = arith.divf %101, %102 : vector<8x1xf32>
    %104 = vector.broadcast %103 : vector<8x1xf32> to vector<8x32xf32>
    %105 = arith.subf %97, %104 : vector<8x32xf32>
    %106 = arith.mulf %105, %105 : vector<8x32xf32>
    %cst_48 = arith.constant dense<0.000000e+00> : vector<8xf32>
    %107 = vector.multi_reduction <add>, %106, %cst_48 [1] : vector<8x32xf32> to vector<8xf32>
    %108 = vector.shape_cast %107 : vector<8xf32> to vector<8x1xf32>
    %cst_49 = arith.constant 3.200000e+01 : f32
    %109 = vector.broadcast %cst_49 : f32 to vector<8x1xf32>
    %110 = arith.divf %108, %109 : vector<8x1xf32>
    %111 = vector.broadcast %103 : vector<8x1xf32> to vector<8x32xf32>
    %112 = arith.subf %97, %111 : vector<8x32xf32>
    %cst_50 = arith.constant 9.99999974E-6 : f32
    %113 = vector.broadcast %cst_50 : f32 to vector<8x1xf32>
    %114 = arith.addf %110, %113 : vector<8x1xf32>
    %115 = math.rsqrt %114 : vector<8x1xf32>
    %116 = vector.broadcast %115 : vector<8x1xf32> to vector<8x32xf32>
    %117 = arith.mulf %112, %116 : vector<8x32xf32>
    %118 = vector.broadcast %98 : vector<1x32xf32> to vector<8x32xf32>
    %119 = arith.mulf %117, %118 : vector<8x32xf32>
    %120 = vector.broadcast %99 : vector<1x32xf32> to vector<8x32xf32>
    %121 = arith.addf %119, %120 : vector<8x32xf32>
    %122 = arith.truncf %121 : vector<8x32xf32> to vector<8x32xbf16>
    %cst_51 = arith.constant 0.000000e+00 : f32
    %123 = vector.broadcast %cst_51 : f32 to vector<8x32xf32>
    %c0_52 = arith.constant 0 : index
    %c0_53 = arith.constant 0 : index
    %124 = vector.load %arg12[%c0_52, %c0_53] : memref<32x128xbf16, #tpu.memory_space<vmem>>, vector<32x128xbf16>
    %cst_54 = arith.constant dense<0.000000e+00> : vector<8x128xf32>
    %125 = tpu.matmul %122, %124, %cst_54 {dimension_numbers = #tpu.dot_dimension_numbers<[1], [0], [0], [1], [0, 0, 1, 1], [], []>} : vector<8x32xbf16>, vector<32x128xbf16>, vector<8x128xf32> -> vector<8x128xf32>
    %c0_55 = arith.constant 0 : index
    %c0_56 = arith.constant 0 : index
    %126 = vector.load %arg13[%c0_55, %c0_56] : memref<1x128xf32, #tpu.memory_space<vmem>>, vector<1x128xf32>
    %127 = vector.broadcast %126 : vector<1x128xf32> to vector<8x128xf32>
    %128 = arith.addf %125, %127 : vector<8x128xf32>
    %cst_57 = arith.constant 5.000000e-01 : f32
    %129 = vector.broadcast %cst_57 : f32 to vector<8x128xf32>
    %130 = arith.mulf %129, %128 : vector<8x128xf32>
    %cst_58 = arith.constant 0.707106769 : f32
    %131 = vector.broadcast %cst_58 : f32 to vector<8x128xf32>
    %132 = arith.mulf %128, %131 : vector<8x128xf32>
    %133 = math.erf %132 : vector<8x128xf32>
    %cst_59 = arith.constant 1.000000e+00 : f32
    %134 = vector.broadcast %cst_59 : f32 to vector<8x128xf32>
    %135 = arith.addf %134, %133 : vector<8x128xf32>
    %136 = arith.mulf %130, %135 : vector<8x128xf32>
    %137 = arith.truncf %136 : vector<8x128xf32> to vector<8x128xbf16>
    %c0_60 = arith.constant 0 : index
    %c0_61 = arith.constant 0 : index
    %138 = vector.load %arg14[%c0_60, %c0_61] : memref<128x32xbf16, #tpu.memory_space<vmem>>, vector<128x32xbf16>
    %cst_62 = arith.constant dense<0.000000e+00> : vector<8x32xf32>
    %139 = tpu.matmul %137, %138, %cst_62 {dimension_numbers = #tpu.dot_dimension_numbers<[1], [0], [0], [1], [0, 0, 1, 1], [], []>} : vector<8x128xbf16>, vector<128x32xbf16>, vector<8x32xf32> -> vector<8x32xf32>
    %140 = arith.addf %123, %139 : vector<8x32xf32>
    %141 = arith.addf %97, %140 : vector<8x32xf32>
    %c0_63 = arith.constant 0 : index
    %c0_64 = arith.constant 0 : index
    %142 = vector.load %arg15[%c0_63, %c0_64] : memref<1x32xf32, #tpu.memory_space<vmem>>, vector<1x32xf32>
    %143 = vector.broadcast %142 : vector<1x32xf32> to vector<8x32xf32>
    %144 = arith.addf %141, %143 : vector<8x32xf32>
    %c0_65 = arith.constant 0 : index
    %c0_66 = arith.constant 0 : index
    %c0_67 = arith.constant 0 : index
    %145 = vector.load %arg16[%c0_65, %c0_66, %c0_67] : memref<1x8x32xf32, #tpu.memory_space<vmem>>, vector<1x8x32xf32>
    %146 = vector.shape_cast %145 : vector<1x8x32xf32> to vector<8x32xf32>
    %147 = vector.shape_cast %144 : vector<8x32xf32> to vector<1x8x32xf32>
    tpu.vector_store %arg16[%c0_65, %c0_66, %c0_67], %147 {strides = array<i32>} : memref<1x8x32xf32, #tpu.memory_space<vmem>>, vector<1x8x32xf32>,
    return
  }
  func.func @transform_0(%arg0: i32, %arg1: i32) -> (i32, i32, i32) {
    %c0_i32 = arith.constant 0 : i32
    %c0_i32_0 = arith.constant 0 : i32
    %c0_i32_1 = arith.constant 0 : i32
    return %arg0, %c0_i32, %c0_i32_0 : i32, i32, i32
  }
  func.func @transform_1(%arg0: i32, %arg1: i32) -> (i32, i32) {
    %c0_i32 = arith.constant 0 : i32
    %c0_i32_0 = arith.constant 0 : i32
    %c0_i32_1 = arith.constant 0 : i32
    return %c0_i32, %c0_i32_0 : i32, i32
  }
  func.func @transform_2(%arg0: i32, %arg1: i32) -> (i32, i32) {
    %c0_i32 = arith.constant 0 : i32
    %c0_i32_0 = arith.constant 0 : i32
    %c0_i32_1 = arith.constant 0 : i32
    return %c0_i32, %c0_i32_0 : i32, i32
  }
  func.func @transform_3(%arg0: i32, %arg1: i32) -> (i32, i32) {
    %c0_i32 = arith.constant 0 : i32
    %c0_i32_0 = arith.constant 0 : i32
    %c0_i32_1 = arith.constant 0 : i32
    return %c0_i32, %c0_i32_0 : i32, i32
  }
  func.func @transform_4(%arg0: i32, %arg1: i32) -> (i32, i32) {
    %c0_i32 = arith.constant 0 : i32
    %c0_i32_0 = arith.constant 0 : i32
    %c0_i32_1 = arith.constant 0 : i32
    return %c0_i32, %c0_i32_0 : i32, i32
  }
  func.func @transform_5(%arg0: i32, %arg1: i32) -> (i32, i32) {
    %c0_i32 = arith.constant 0 : i32
    %c0_i32_0 = arith.constant 0 : i32
    %c0_i32_1 = arith.constant 0 : i32
    return %c0_i32, %c0_i32_0 : i32, i32
  }
  func.func @transform_6(%arg0: i32, %arg1: i32) -> (i32, i32) {
    %c0_i32 = arith.constant 0 : i32
    %c0_i32_0 = arith.constant 0 : i32
    %c0_i32_1 = arith.constant 0 : i32
    return %c0_i32, %c0_i32_0 : i32, i32
  }
  func.func @transform_7(%arg0: i32, %arg1: i32) -> (i32, i32) {
    %c0_i32 = arith.constant 0 : i32
    %c0_i32_0 = arith.constant 0 : i32
    %c0_i32_1 = arith.constant 0 : i32
    return %c0_i32, %c0_i32_0 : i32, i32
  }
  func.func @transform_8(%arg0: i32, %arg1: i32) -> (i32, i32) {
    %c0_i32 = arith.constant 0 : i32
    %c0_i32_0 = arith.constant 0 : i32
    %c0_i32_1 = arith.constant 0 : i32
    return %c0_i32, %c0_i32_0 : i32, i32
  }
  func.func @transform_9(%arg0: i32, %arg1: i32) -> (i32, i32) {
    %c0_i32 = arith.constant 0 : i32
    %c0_i32_0 = arith.constant 0 : i32
    %c0_i32_1 = arith.constant 0 : i32
    return %c0_i32, %c0_i32_0 : i32, i32
  }
  func.func @transform_10(%arg0: i32, %arg1: i32) -> (i32, i32) {
    %c0_i32 = arith.constant 0 : i32
    %c0_i32_0 = arith.constant 0 : i32
    %c0_i32_1 = arith.constant 0 : i32
    return %c0_i32, %c0_i32_0 : i32, i32
  }
  func.func @transform_11(%arg0: i32, %arg1: i32) -> (i32, i32) {
    %c0_i32 = arith.constant 0 : i32
    %c0_i32_0 = arith.constant 0 : i32
    %c0_i32_1 = arith.constant 0 : i32
    return %c0_i32, %c0_i32_0 : i32, i32
  }
  func.func @transform_12(%arg0: i32, %arg1: i32) -> (i32, i32) {
    %c0_i32 = arith.constant 0 : i32
    %c0_i32_0 = arith.constant 0 : i32
    %c0_i32_1 = arith.constant 0 : i32
    return %c0_i32, %c0_i32_0 : i32, i32
  }
  func.func @transform_13(%arg0: i32, %arg1: i32) -> (i32, i32) {
    %c0_i32 = arith.constant 0 : i32
    %c0_i32_0 = arith.constant 0 : i32
    %c0_i32_1 = arith.constant 0 : i32
    return %c0_i32, %c0_i32_0 : i32, i32
  }
  func.func @transform_14(%arg0: i32, %arg1: i32) -> (i32, i32, i32) {
    %c0_i32 = arith.constant 0 : i32
    %c0_i32_0 = arith.constant 0 : i32
    return %arg0, %arg1, %c0_i32 : i32, i32, i32
  }
}

</mosaic_0001>

<llo_original>
// kernel: tpu_custom_call.1
$region0: #{tpu_custom_call.1}
  #allocation0 [shape = 'u32[]', space=smem, size = 0x4, offset = 0x4, fixed_abs, tag = 'smem constant byte address 0x4 - core index']
  #allocation1 [shape = 'u32[144,128]{1,0:T(1,128)}', space=vmem, size = 0x12000, scoped, tag = 'internal scratch']
  #allocation2 [shape = 'bf16[8,32]{1,0:T(8,128)(2,1)}', space=vmem, size = 0x800, scoped, tag = 'scratch operand']
  #allocation3 [shape = 'bf16[8,32]{1,0:T(8,128)(2,1)}', space=vmem, size = 0x800, scoped, tag = 'scratch operand']
  #allocation4 [shape = 'bf16[8,32]{1,0:T(8,128)(2,1)}', space=vmem, size = 0x800, scoped, tag = 'scratch operand']
  #allocation5 [shape = 'bf16[8,32]{1,0:T(8,128)(2,1)}', space=vmem, size = 0x800, scoped, tag = 'scratch operand']
  %s0 = inlined_call_operand.vmem [shape: f32[2,8,32], index: 0, kind: input, shape index: {}]
  %s1 = inlined_call_operand.vmem [shape: f32[1,32], index: 1, kind: input, shape index: {}]
  %s2 = inlined_call_operand.vmem [shape: f32[1,32], index: 2, kind: input, shape index: {}]
  %s3 = inlined_call_operand.vmem [shape: bf16[32,32], index: 3, kind: input, shape index: {}]
  %s4 = inlined_call_operand.vmem [shape: bf16[32,32], index: 4, kind: input, shape index: {}]
  %s5 = inlined_call_operand.vmem [shape: bf16[32,32], index: 5, kind: input, shape index: {}]
  %s6 = inlined_call_operand.vmem [shape: bf16[32,32], index: 6, kind: input, shape index: {}]
  %s7 = inlined_call_operand.vmem [shape: f32[1,32], index: 7, kind: input, shape index: {}]
  %s8 = inlined_call_operand.vmem [shape: f32[1,32], index: 8, kind: input, shape index: {}]
  %s9 = inlined_call_operand.vmem [shape: f32[1,32], index: 9, kind: input, shape index: {}]
  %s10 = inlined_call_operand.hbm [shape: bf16[32,128], index: 10, kind: input, shape index: {}]
  %s11 = inlined_call_operand.hbm [shape: f32[1,128], index: 11, kind: input, shape index: {}]
  %s12 = inlined_call_operand.vmem [shape: bf16[128,32], index: 12, kind: input, shape index: {}]
  %s13 = inlined_call_operand.vmem [shape: f32[1,32], index: 13, kind: input, shape index: {}]
  %s14 = inlined_call_operand.hbm [shape: f32[2,8,32], index: 14, kind: output, shape index: {}]
  %s15 = sld [smem:[#allocation0]]
  $region101: #{tpu_custom_call.1} parent=0
    _
  %s17 = ssub.s32 1, %s15
  %s18 = scalar_select 0, %s17, %s15
  $region1: #{tpu_custom_call.1} parent=0
    #allocation6 [shape = 'u8[8192]{0}', space=vmem, size = 0x2000, scoped, tag = 'input window, operand 10, single buffered']
    #allocation7 [shape = 's32[2]{0}', space=sflag, size = 0x8, scoped, tag = 'scoped memory for tpu_custom_call.1']
    #allocation8 [shape = 's32[2]{0}', space=sflag, size = 0x8, scoped, tag = 'scoped memory for tpu_custom_call.1']
    #allocation9 [shape = 'u8[512]{0}', space=vmem, size = 0x400, scoped, tag = 'input window, operand 11, single buffered']
    #allocation10 [shape = 's32[1]{0}', space=sflag, size = 0x4, scoped, tag = 'scoped memory for tpu_custom_call.1']
    #allocation11 [shape = 'u8[8192]{0}', space=vmem, size = 0x2000, scoped, tag = 'output window, operand 0']
    %19 = vsyncpa [#allocation7], 0
    %20 = vsyncpa [#allocation10], 0
    %21 = vsyncpa [#allocation8], 0
    %s22 = scalar_lea.sflag [#allocation8], 1
    %23 = vsyncpa %s22, 0
    loop: start=0, step=1, limit=4
    $region2: #{tpu_custom_call.1} parent=1 // loop_pre_header
      _
    $region3: #{tpu_custom_call.1} parent=1 // loop_header
      %s25 = sphi 0, %s29
      %p26 = scmp.ge.s32.totalorder %s25, 4
      %s32 = sphi 0, %s44
      %s33 = sphi 0, %s40
      %s34 = sphi 0, %s32
      %s35 = sphi 0, %s33
      %s36 = sphi 0, %s34
      %s37 = sphi 0, %s35
      %s47 = sphi 0, %s49
      %s50 = sphi 0, %s47
      %s51 = sphi 0, %s50
      %s67 = sphi 0, %s51
      %s71 = sphi 0, %s71
      %s73 = sphi 0, %s71
      %s74 = sphi 0, %s73
      %s88 = sphi 0, %s74
      %s92 = sphi 0, %s92
      %s94 = sphi 0, %s92
      %s95 = sphi 0, %s94
      %s109 = sphi 0, %s95
      %s113 = sphi 0, %s113
      %s115 = sphi 0, %s113
      %s116 = sphi 0, %s115
      %s130 = sphi 0, %s116
      %s134 = sphi 0, %s134
      %s136 = sphi 0, %s134
      %s137 = sphi 0, %s136
      %s151 = sphi 0, %s137
      %s155 = sphi 0, %s155
      %s157 = sphi 0, %s155
      %s158 = sphi 0, %s157
      %s172 = sphi 0, %s158
      %s176 = sphi 0, %s176
      %s178 = sphi 0, %s176
      %s179 = sphi 0, %s178
      %s193 = sphi 0, %s179
      %s197 = sphi 0, %s197
      %s199 = sphi 0, %s197
      %s200 = sphi 0, %s199
      %s214 = sphi 0, %s200
      %s218 = sphi 0, %s218
      %s220 = sphi 0, %s218
      %s221 = sphi 0, %s220
      %s235 = sphi 0, %s221
      %s239 = sphi 0, %s239
      %s241 = sphi 0, %s239
      %s242 = sphi 0, %s241
      %s256 = sphi 0, %s242
      %s260 = sphi 0, %s260
      %s262 = sphi 0, %s260
      %s263 = sphi 0, %s262
      %s277 = sphi 0, %s263
      %s281 = sphi 0, %s281
      %s283 = sphi 0, %s281
      %s284 = sphi 0, %s283
      %s298 = sphi 0, %s284
      %s302 = sphi 0, %s302
      %s304 = sphi 0, %s302
      %s305 = sphi 0, %s304
      %s319 = sphi 0, %s305
      %s323 = sphi 0, %s323
      %s325 = sphi 0, %s323
      %s326 = sphi 0, %s325
      %s340 = sphi 0, %s326
      %s348 = sphi 0, %s350
      %s351 = sphi 0, %s348
      %s352 = sphi 0, %s351
      %s368 = sphi 0, %s352
    $region4: #{tpu_custom_call.1} parent=1 // loop_header_branch
      %28 = sbr.rel (%p26) target = $region8
    $region5: #{tpu_custom_call.1} parent=1 // loop_body
      %s30 = ssub.s32 %s25, 1
      %s31 = ssub.s32 %s25, 2
      %s38 = sadd.s32 1, %s33
      %p39 = scmp.ge.s32.totalorder %s38, 1
      %s40 = scalar_select %p39, 0, %s38
      %s41 = sadd.s32 1, %s32
      %s42 = scalar_select %p39, %s41, %s32
      %p43 = scmp.ge.s32.totalorder %s42, 2
      %s44 = scalar_select %p43, 0, %s42
      %s45 = ssub.s32 %s32, %s44
      %p46 = scmp.eq.s32.totalorder %s45, 0
      %s48 = sadd.s32 %s47, 1
      %s49 = scalar_select %p46, %s47, %s48
      %p52 = pneg %p46
      %p53 = scmp.eq.s32.totalorder %s25, 1
      %p54 = por %p52, %p53
      %p55 = scmp.ne.s32.totalorder %s47, %s50
      %p56 = scmp.eq.s32.totalorder %s25, 0
      %p57 = por %p55, %p56
      %p58 = scmp.ne.s32.totalorder %s47, %s50
      %p59 = scmp.eq.s32.totalorder %s30, 1
      %p60 = por %p58, %p59
      %p61 = scmp.ne.s32.totalorder %s50, %s51
      %p62 = scmp.eq.s32.totalorder %s30, 0
      %p63 = por %p61, %p62
      %p64 = scmp.ne.s32.totalorder %s50, %s51
      %p65 = scmp.eq.s32.totalorder %s31, 1
      %p66 = por %p64, %p65
      %p68 = scmp.ne.s32.totalorder %s51, %s67
      %p69 = scmp.eq.s32.totalorder %s31, 0
      %p70 = por %p68, %p69
      %s72 = sadd.s32 %s71, 1
      %p75 = scmp.eq.s32.totalorder %s25, 1
      %p76 = scmp.ne.s32.totalorder %s71, %s73
      %p77 = scmp.eq.s32.totalorder %s25, 0
      %p78 = por %p76, %p77
      %p79 = scmp.ne.s32.totalorder %s71, %s73
      %p80 = scmp.eq.s32.totalorder %s30, 1
      %p81 = por %p79, %p80
      %p82 = scmp.ne.s32.totalorder %s73, %s74
      %p83 = scmp.eq.s32.totalorder %s30, 0
      %p84 = por %p82, %p83
      %p85 = scmp.ne.s32.totalorder %s73, %s74
      %p86 = scmp.eq.s32.totalorder %s31, 1
      %p87 = por %p85, %p86
      %p89 = scmp.ne.s32.totalorder %s74, %s88
      %p90 = scmp.eq.s32.totalorder %s31, 0
      %p91 = por %p89, %p90
      %s93 = sadd.s32 %s92, 1
      %p96 = scmp.eq.s32.totalorder %s25, 1
      %p97 = scmp.ne.s32.totalorder %s92, %s94
      %p98 = scmp.eq.s32.totalorder %s25, 0
      %p99 = por %p97, %p98
      %p100 = scmp.ne.s32.totalorder %s92, %s94
      %p101 = scmp.eq.s32.totalorder %s30, 1
      %p102 = por %p100, %p101
      %p103 = scmp.ne.s32.totalorder %s94, %s95
      %p104 = scmp.eq.s32.totalorder %s30, 0
      %p105 = por %p103, %p104
      %p106 = scmp.ne.s32.totalorder %s94, %s95
      %p107 = scmp.eq.s32.totalorder %s31, 1
      %p108 = por %p106, %p107
      %p110 = scmp.ne.s32.totalorder %s95, %s109
      %p111 = scmp.eq.s32.totalorder %s31, 0
      %p112 = por %p110, %p111
      %s114 = sadd.s32 %s113, 1
      %p117 = scmp.eq.s32.totalorder %s25, 1
      %p118 = scmp.ne.s32.totalorder %s113, %s115
      %p119 = scmp.eq.s32.totalorder %s25, 0
      %p120 = por %p118, %p119
      %p121 = scmp.ne.s32.totalorder %s113, %s115
      %p122 = scmp.eq.s32.totalorder %s30, 1
      %p123 = por %p121, %p122
      %p124 = scmp.ne.s32.totalorder %s115, %s116
      %p125 = scmp.eq.s32.totalorder %s30, 0
      %p126 = por %p124, %p125
      %p127 = scmp.ne.s32.totalorder %s115, %s116
      %p128 = scmp.eq.s32.totalorder %s31, 1
      %p129 = por %p127, %p128
      %p131 = scmp.ne.s32.totalorder %s116, %s130
      %p132 = scmp.eq.s32.totalorder %s31, 0
      %p133 = por %p131, %p132
      %s135 = sadd.s32 %s134, 1
      %p138 = scmp.eq.s32.totalorder %s25, 1
      %p139 = scmp.ne.s32.totalorder %s134, %s136
      %p140 = scmp.eq.s32.totalorder %s25, 0
      %p141 = por %p139, %p140
      %p142 = scmp.ne.s32.totalorder %s134, %s136
      %p143 = scmp.eq.s32.totalorder %s30, 1
      %p144 = por %p142, %p143
      %p145 = scmp.ne.s32.totalorder %s136, %s137
      %p146 = scmp.eq.s32.totalorder %s30, 0
      %p147 = por %p145, %p146
      %p148 = scmp.ne.s32.totalorder %s136, %s137
      %p149 = scmp.eq.s32.totalorder %s31, 1
      %p150 = por %p148, %p149
      %p152 = scmp.ne.s32.totalorder %s137, %s151
      %p153 = scmp.eq.s32.totalorder %s31, 0
      %p154 = por %p152, %p153
      %s156 = sadd.s32 %s155, 1
      %p159 = scmp.eq.s32.totalorder %s25, 1
      %p160 = scmp.ne.s32.totalorder %s155, %s157
      %p161 = scmp.eq.s32.totalorder %s25, 0
      %p162 = por %p160, %p161
      %p163 = scmp.ne.s32.totalorder %s155, %s157
      %p164 = scmp.eq.s32.totalorder %s30, 1
      %p165 = por %p163, %p164
      %p166 = scmp.ne.s32.totalorder %s157, %s158
      %p167 = scmp.eq.s32.totalorder %s30, 0
      %p168 = por %p166, %p167
      %p169 = scmp.ne.s32.totalorder %s157, %s158
      %p170 = scmp.eq.s32.totalorder %s31, 1
      %p171 = por %p169, %p170
      %p173 = scmp.ne.s32.totalorder %s158, %s172
      %p174 = scmp.eq.s32.totalorder %s31, 0
      %p175 = por %p173, %p174
      %s177 = sadd.s32 %s176, 1
      %p180 = scmp.eq.s32.totalorder %s25, 1
      %p181 = scmp.ne.s32.totalorder %s176, %s178
      %p182 = scmp.eq.s32.totalorder %s25, 0
      %p183 = por %p181, %p182
      %p184 = scmp.ne.s32.totalorder %s176, %s178
      %p185 = scmp.eq.s32.totalorder %s30, 1
      %p186 = por %p184, %p185
      %p187 = scmp.ne.s32.totalorder %s178, %s179
      %p188 = scmp.eq.s32.totalorder %s30, 0
      %p189 = por %p187, %p188
      %p190 = scmp.ne.s32.totalorder %s178, %s179
      %p191 = scmp.eq.s32.totalorder %s31, 1
      %p192 = por %p190, %p191
      %p194 = scmp.ne.s32.totalorder %s179, %s193
      %p195 = scmp.eq.s32.totalorder %s31, 0
      %p196 = por %p194, %p195
      %s198 = sadd.s32 %s197, 1
      %p201 = scmp.eq.s32.totalorder %s25, 1
      %p202 = scmp.ne.s32.totalorder %s197, %s199
      %p203 = scmp.eq.s32.totalorder %s25, 0
      %p204 = por %p202, %p203
      %p205 = scmp.ne.s32.totalorder %s197, %s199
      %p206 = scmp.eq.s32.totalorder %s30, 1
      %p207 = por %p205, %p206
      %p208 = scmp.ne.s32.totalorder %s199, %s200
      %p209 = scmp.eq.s32.totalorder %s30, 0
      %p210 = por %p208, %p209
      %p211 = scmp.ne.s32.totalorder %s199, %s200
      %p212 = scmp.eq.s32.totalorder %s31, 1
      %p213 = por %p211, %p212
      %p215 = scmp.ne.s32.totalorder %s200, %s214
      %p216 = scmp.eq.s32.totalorder %s31, 0
      %p217 = por %p215, %p216
      %s219 = sadd.s32 %s218, 1
      %p222 = scmp.eq.s32.totalorder %s25, 1
      %p223 = scmp.ne.s32.totalorder %s218, %s220
      %p224 = scmp.eq.s32.totalorder %s25, 0
      %p225 = por %p223, %p224
      %p226 = scmp.ne.s32.totalorder %s218, %s220
      %p227 = scmp.eq.s32.totalorder %s30, 1
      %p228 = por %p226, %p227
      %p229 = scmp.ne.s32.totalorder %s220, %s221
      %p230 = scmp.eq.s32.totalorder %s30, 0
      %p231 = por %p229, %p230
      %p232 = scmp.ne.s32.totalorder %s220, %s221
      %p233 = scmp.eq.s32.totalorder %s31, 1
      %p234 = por %p232, %p233
      %p236 = scmp.ne.s32.totalorder %s221, %s235
      %p237 = scmp.eq.s32.totalorder %s31, 0
      %p238 = por %p236, %p237
      %s240 = sadd.s32 %s239, 1
      %p243 = scmp.eq.s32.totalorder %s25, 1
      %p244 = scmp.ne.s32.totalorder %s239, %s241
      %p245 = scmp.eq.s32.totalorder %s25, 0
      %p246 = por %p244, %p245
      %p247 = scmp.ne.s32.totalorder %s239, %s241
      %p248 = scmp.eq.s32.totalorder %s30, 1
      %p249 = por %p247, %p248
      %p250 = scmp.ne.s32.totalorder %s241, %s242
      %p251 = scmp.eq.s32.totalorder %s30, 0
      %p252 = por %p250, %p251
      %p253 = scmp.ne.s32.totalorder %s241, %s242
      %p254 = scmp.eq.s32.totalorder %s31, 1
      %p255 = por %p253, %p254
      %p257 = scmp.ne.s32.totalorder %s242, %s256
      %p258 = scmp.eq.s32.totalorder %s31, 0
      %p259 = por %p257, %p258
      %s261 = sadd.s32 %s260, 1
      %p264 = scmp.eq.s32.totalorder %s25, 1
      %p265 = scmp.ne.s32.totalorder %s260, %s262
      %p266 = scmp.eq.s32.totalorder %s25, 0
      %p267 = por %p265, %p266
      %p268 = scmp.ne.s32.totalorder %s260, %s262
      %p269 = scmp.eq.s32.totalorder %s30, 1
      %p270 = por %p268, %p269
      %p271 = scmp.ne.s32.totalorder %s262, %s263
      %p272 = scmp.eq.s32.totalorder %s30, 0
      %p273 = por %p271, %p272
      %p274 = scmp.ne.s32.totalorder %s262, %s263
      %p275 = scmp.eq.s32.totalorder %s31, 1
      %p276 = por %p274, %p275
      %p278 = scmp.ne.s32.totalorder %s263, %s277
      %p279 = scmp.eq.s32.totalorder %s31, 0
      %p280 = por %p278, %p279
      %s282 = sadd.s32 %s281, 1
      %p285 = scmp.eq.s32.totalorder %s25, 1
      %p286 = scmp.ne.s32.totalorder %s281, %s283
      %p287 = scmp.eq.s32.totalorder %s25, 0
      %p288 = por %p286, %p287
      %p289 = scmp.ne.s32.totalorder %s281, %s283
      %p290 = scmp.eq.s32.totalorder %s30, 1
      %p291 = por %p289, %p290
      %p292 = scmp.ne.s32.totalorder %s283, %s284
      %p293 = scmp.eq.s32.totalorder %s30, 0
      %p294 = por %p292, %p293
      %p295 = scmp.ne.s32.totalorder %s283, %s284
      %p296 = scmp.eq.s32.totalorder %s31, 1
      %p297 = por %p295, %p296
      %p299 = scmp.ne.s32.totalorder %s284, %s298
      %p300 = scmp.eq.s32.totalorder %s31, 0
      %p301 = por %p299, %p300
      %s303 = sadd.s32 %s302, 1
      %p306 = scmp.eq.s32.totalorder %s25, 1
      %p307 = scmp.ne.s32.totalorder %s302, %s304
      %p308 = scmp.eq.s32.totalorder %s25, 0
      %p309 = por %p307, %p308
      %p310 = scmp.ne.s32.totalorder %s302, %s304
      %p311 = scmp.eq.s32.totalorder %s30, 1
      %p312 = por %p310, %p311
      %p313 = scmp.ne.s32.totalorder %s304, %s305
      %p314 = scmp.eq.s32.totalorder %s30, 0
      %p315 = por %p313, %p314
      %p316 = scmp.ne.s32.totalorder %s304, %s305
      %p317 = scmp.eq.s32.totalorder %s31, 1
      %p318 = por %p316, %p317
      %p320 = scmp.ne.s32.totalorder %s305, %s319
      %p321 = scmp.eq.s32.totalorder %s31, 0
      %p322 = por %p320, %p321
      %s324 = sadd.s32 %s323, 1
      %p327 = scmp.eq.s32.totalorder %s25, 1
      %p328 = scmp.ne.s32.totalorder %s323, %s325
      %p329 = scmp.eq.s32.totalorder %s25, 0
      %p330 = por %p328, %p329
      %p331 = scmp.ne.s32.totalorder %s323, %s325
      %p332 = scmp.eq.s32.totalorder %s30, 1
      %p333 = por %p331, %p332
      %p334 = scmp.ne.s32.totalorder %s325, %s326
      %p335 = scmp.eq.s32.totalorder %s30, 0
      %p336 = por %p334, %p335
      %p337 = scmp.ne.s32.totalorder %s325, %s326
      %p338 = scmp.eq.s32.totalorder %s31, 1
      %p339 = por %p337, %p338
      %p341 = scmp.ne.s32.totalorder %s326, %s340
      %p342 = scmp.eq.s32.totalorder %s31, 0
      %p343 = por %p341, %p342
      %s344 = ssub.s32 %s32, %s44
      %s345 = ssub.s32 %s33, %s40
      %s346 = sor.u32 %s344, %s345
      %p347 = scmp.eq.s32.totalorder %s346, 0
      %s349 = sadd.s32 %s348, 1
      %s350 = scalar_select %p347, %s348, %s349
      %p353 = pneg %p347
      %p354 = scmp.eq.s32.totalorder %s25, 1
      %p355 = por %p353, %p354
      %p356 = scmp.ne.s32.totalorder %s348, %s351
      %p357 = scmp.eq.s32.totalorder %s25, 0
      %p358 = por %p356, %p357
      %p359 = scmp.ne.s32.totalorder %s348, %s351
      %p360 = scmp.eq.s32.totalorder %s30, 1
      %p361 = por %p359, %p360
      %p362 = scmp.ne.s32.totalorder %s351, %s352
      %p363 = scmp.eq.s32.totalorder %s30, 0
      %p364 = por %p362, %p363
      %p365 = scmp.ne.s32.totalorder %s351, %s352
      %p366 = scmp.eq.s32.totalorder %s31, 1
      %p367 = por %p365, %p366
      %p369 = scmp.ne.s32.totalorder %s352, %s368
      %p370 = scmp.eq.s32.totalorder %s31, 0
      %p371 = por %p369, %p370
      %p372 = scmp.le.s32.totalorder 1, %s25
      %p373 = scmp.lt.s32.totalorder %s25, 3
      %p374 = pnand %p372, %p373
      %p375 = pneg %p374
      // Predicated region
      $region9: #{tpu_custom_call.1} parent=5 // pred_check
        _
      $region10: #{tpu_custom_call.1} parent=5 // pred_check_branch
        %377 = sbr.rel (%p374) target = $region12
      $region11: #{tpu_custom_call.1} parent=5 // pred_region
        %s378 = ssub.s32 %s25, 1
        // Predicated region
        $region13: #{tpu_custom_call.1} parent=11 // pred_check
          %p379 = pneg %p84
        $region14: #{tpu_custom_call.1} parent=11 // pred_check_branch
          %381 = sbr.rel (%p379) target = $region16
        $region15: #{tpu_custom_call.1} parent=11 // pred_region
          _
        $region16: #{tpu_custom_call.1} parent=11 // pred_fallthru
          _
        // Predicated region
        $region17: #{tpu_custom_call.1} parent=11 // pred_check
          %p382 = pneg %p105
        $region18: #{tpu_custom_call.1} parent=11 // pred_check_branch
          %384 = sbr.rel (%p382) target = $region20
        $region19: #{tpu_custom_call.1} parent=11 // pred_region
          _
        $region20: #{tpu_custom_call.1} parent=11 // pred_fallthru
          _
        // Predicated region
        $region21: #{tpu_custom_call.1} parent=11 // pred_check
          %p385 = pneg %p126
        $region22: #{tpu_custom_call.1} parent=11 // pred_check_branch
          %387 = sbr.rel (%p385) target = $region24
        $region23: #{tpu_custom_call.1} parent=11 // pred_region
          _
        $region24: #{tpu_custom_call.1} parent=11 // pred_fallthru
          _
        // Predicated region
        $region25: #{tpu_custom_call.1} parent=11 // pred_check
          %p388 = pneg %p147
        $region26: #{tpu_custom_call.1} parent=11 // pred_check_branch
          %390 = sbr.rel (%p388) target = $region28
        $region27: #{tpu_custom_call.1} parent=11 // pred_region
          _
        $region28: #{tpu_custom_call.1} parent=11 // pred_fallthru
          _
        // Predicated region
        $region29: #{tpu_custom_call.1} parent=11 // pred_check
          %p391 = pneg %p168
        $region30: #{tpu_custom_call.1} parent=11 // pred_check_branch
          %393 = sbr.rel (%p391) target = $region32
        $region31: #{tpu_custom_call.1} parent=11 // pred_region
          _
        $region32: #{tpu_custom_call.1} parent=11 // pred_fallthru
          _
        // Predicated region
        $region33: #{tpu_custom_call.1} parent=11 // pred_check
          %p394 = pneg %p189
        $region34: #{tpu_custom_call.1} parent=11 // pred_check_branch
          %396 = sbr.rel (%p394) target = $region36
        $region35: #{tpu_custom_call.1} parent=11 // pred_region
          _
        $region36: #{tpu_custom_call.1} parent=11 // pred_fallthru
          _
        // Predicated region
        $region37: #{tpu_custom_call.1} parent=11 // pred_check
          %p397 = pneg %p210
        $region38: #{tpu_custom_call.1} parent=11 // pred_check_branch
          %399 = sbr.rel (%p397) target = $region40
        $region39: #{tpu_custom_call.1} parent=11 // pred_region
          _
        $region40: #{tpu_custom_call.1} parent=11 // pred_fallthru
          _
        // Predicated region
        $region41: #{tpu_custom_call.1} parent=11 // pred_check
          %p400 = pneg %p231
        $region42: #{tpu_custom_call.1} parent=11 // pred_check_branch
          %402 = sbr.rel (%p400) target = $region44
        $region43: #{tpu_custom_call.1} parent=11 // pred_region
          _
        $region44: #{tpu_custom_call.1} parent=11 // pred_fallthru
          _
        // Predicated region
        $region45: #{tpu_custom_call.1} parent=11 // pred_check
          %p403 = pneg %p252
        $region46: #{tpu_custom_call.1} parent=11 // pred_check_branch
          %405 = sbr.rel (%p403) target = $region48
        $region47: #{tpu_custom_call.1} parent=11 // pred_region
          _
        $region48: #{tpu_custom_call.1} parent=11 // pred_fallthru
          _
        // Predicated region
        $region49: #{tpu_custom_call.1} parent=11 // pred_check
          %p406 = pneg %p273
        $region50: #{tpu_custom_call.1} parent=11 // pred_check_branch
          %408 = sbr.rel (%p406) target = $region52
        $region51: #{tpu_custom_call.1} parent=11 // pred_region
          %s410 = ssub.s32 256, 256
          %411 = vsyncadd [#allocation7], %s410
          %s412 = sshll.u32 [#allocation6], 4
          %s413 = int_to_ptr.vmem [resolvable:$true] %s412
          %418 = dma.hbm_to_vmem [thread:$0]  %s10, 256, %s413, [#allocation7], 64, 64, 4
        $region52: #{tpu_custom_call.1} parent=11 // pred_fallthru
          _
        // Predicated region
        $region53: #{tpu_custom_call.1} parent=11 // pred_check
          %p419 = pneg %p294
        $region54: #{tpu_custom_call.1} parent=11 // pred_check_branch
          %421 = sbr.rel (%p419) target = $region56
        $region55: #{tpu_custom_call.1} parent=11 // pred_region
          %s423 = ssub.s32 16, 16
          %424 = vsyncadd [#allocation10], %s423
          %s426 = sshll.u32 [#allocation9], 4
          %s427 = int_to_ptr.vmem [resolvable:$true] %s426
          %429 = dma.hbm_to_vmem [thread:$0]  %s11, 16, %s427, [#allocation10]
        $region56: #{tpu_custom_call.1} parent=11 // pred_fallthru
          _
        // Predicated region
        $region57: #{tpu_custom_call.1} parent=11 // pred_check
          %p430 = pneg %p315
        $region58: #{tpu_custom_call.1} parent=11 // pred_check_branch
          %432 = sbr.rel (%p430) target = $region60
        $region59: #{tpu_custom_call.1} parent=11 // pred_region
          _
        $region60: #{tpu_custom_call.1} parent=11 // pred_fallthru
          _
        // Predicated region
        $region61: #{tpu_custom_call.1} parent=11 // pred_check
          %p433 = pneg %p336
        $region62: #{tpu_custom_call.1} parent=11 // pred_check_branch
          %435 = sbr.rel (%p433) target = $region64
        $region63: #{tpu_custom_call.1} parent=11 // pred_region
          _
        $region64: #{tpu_custom_call.1} parent=11 // pred_fallthru
          _
      $region12: #{tpu_custom_call.1} parent=5 // pred_fallthru
        _
      %p436 = scmp.lt.s32.totalorder %s25, 2
      // Predicated region
      $region65: #{tpu_custom_call.1} parent=5 // pred_check
        %p437 = pneg %p436
      $region66: #{tpu_custom_call.1} parent=5 // pred_check_branch
        %439 = sbr.rel (%p437) target = $region68
      $region67: #{tpu_custom_call.1} parent=5 // pred_region
        // Predicated region
        $region69: #{tpu_custom_call.1} parent=67 // pred_check
          %p440 = pneg %p57
        $region70: #{tpu_custom_call.1} parent=67 // pred_check_branch
          %442 = sbr.rel (%p440) target = $region72
        $region71: #{tpu_custom_call.1} parent=67 // pred_region
          %p443 = scmp.lt.s32.totalorder %s32, 1
          %s444 = scalar_select %p443, %s32, 1
          %s445 = smul.addr %s444, 8
          %s446 = scalar_lea.vmem %s0, %s445
        $region72: #{tpu_custom_call.1} parent=67 // pred_fallthru
          _
      $region68: #{tpu_custom_call.1} parent=5 // pred_fallthru
        _
      %p447 = scmp.le.s32.totalorder 1, %s25
      %p448 = scmp.lt.s32.totalorder %s25, 3
      %p449 = pnand %p447, %p448
      %p450 = pneg %p449
      // Predicated region
      $region73: #{tpu_custom_call.1} parent=5 // pred_check
        _
      $region74: #{tpu_custom_call.1} parent=5 // pred_check_branch
        %452 = sbr.rel (%p449) target = $region76
      $region75: #{tpu_custom_call.1} parent=5 // pred_region
        %s453 = ssub.s32 %s25, 1
        // Predicated region
        $region77: #{tpu_custom_call.1} parent=75 // pred_check
          %p454 = pneg %p273
        $region78: #{tpu_custom_call.1} parent=75 // pred_check_branch
          %456 = sbr.rel (%p454) target = $region80
        $region79: #{tpu_custom_call.1} parent=75 // pred_region
          %457 = dma.done [#allocation7], 256
        $region80: #{tpu_custom_call.1} parent=75 // pred_fallthru
          _
        // Predicated region
        $region81: #{tpu_custom_call.1} parent=75 // pred_check
          %p458 = pneg %p294
        $region82: #{tpu_custom_call.1} parent=75 // pred_check_branch
          %460 = sbr.rel (%p458) target = $region84
        $region83: #{tpu_custom_call.1} parent=75 // pred_region
          %461 = dma.done [#allocation10], 16
        $region84: #{tpu_custom_call.1} parent=75 // pred_fallthru
          _
        %p462 = scmp.lt.s32.totalorder %s34, 1
        %s463 = scalar_select %p462, %s34, 1
        %s464 = smul.addr %s463, 8
        %s465 = scalar_lea.vmem %s0, %s464
        %p466 = pneg %p63
        %p467 = pneg %p60
        %p468 = pneg %p84
        %p469 = pneg %p81
        %p470 = pneg %p105
        %p471 = pneg %p102
        %p472 = pneg %p126
        %p473 = pneg %p123
        %p474 = pneg %p147
        %p475 = pneg %p144
        %p476 = pneg %p168
        %p477 = pneg %p165
        %p478 = pneg %p189
        %p479 = pneg %p186
        %p480 = pneg %p210
        %p481 = pneg %p207
        %p482 = pneg %p231
        %p483 = pneg %p228
        %p484 = pneg %p252
        %p485 = pneg %p249
        %p486 = pneg %p273
        %p487 = pneg %p270
        %p488 = pneg %p294
        %p489 = pneg %p291
        %p490 = pneg %p315
        %p491 = pneg %p312
        %p492 = pneg %p336
        %p493 = pneg %p333
        %p494 = pneg %p364
        %p495 = pneg %p361
        %s496 = sand.u32 %s351, 1
        %s497 = scalar_lea.sflag [#allocation8], %s496
        %s498 = sand.u32 %s351, 1
        %s499 = smul.addr %s498, 8
        %s500 = scalar_lea.vmem [#allocation11], %s499
        %p501 = scmp.lt.s32.totalorder %s34, 1
        %s502 = scalar_select %p501, %s34, 1
        %s503 = smul.addr %s502, 8
        %s504 = scalar_lea.vmem %s0, %s503
        %v506 = vld [vmem:[%s1] sm:$0x1]
        %v507 = vld [vmem:[%s2] sm:$0x1]
        %p508 = scmp.eq.s32.totalorder %s35, 0
        // Predicated region
        $region85: #{tpu_custom_call.1} parent=75 // pred_check
          %p509 = pneg %p508
        $region86: #{tpu_custom_call.1} parent=75 // pred_check_branch
          %511 = sbr.rel (%p509) target = $region88
        $region87: #{tpu_custom_call.1} parent=75 // pred_region
          %v512 = vld [vmem:[%s504] sm:$0xff]
          %vm513 = vcmask 261120
          %v514 = vsel %vm513, %v512, 0.0
          %515 = vadd.xlane.f32.xlu0 %v514
          %v516 = vpop.xlane.xlu0 %515
          %v517 = vrcp.pop 32.0
          %v518 = vmul.f32 %v516, %v517
          %v519 = vsub.f32 %v512, %v518
          %v520 = vmul.f32 %v519, %v519
          %v521 = vsel %vm513, %v520, 0.0
          %522 = vadd.xlane.f32.xlu0 %v521
          %v523 = vpop.xlane.xlu0 %522
          %v524 = vmul.f32 %v523, %v517
          %v525 = vadd.f32 %v524, 1e-05
          %v526 = vrsqrt.pop %v525
          %v527 = vmul.f32 %v519, %v526
          %v529 = vlaneseq
          %v530 = vshrl.u32 %v529, 7
          %v531 = vsub.s32 0, %v530
          %v532 = vrot.slane %v506, %v531
          %v534 = vmul.f32 %v527, %v532
          %v536 = vlaneseq
          %v537 = vshrl.u32 %v536, 7
          %v538 = vsub.s32 0, %v537
          %v539 = vrot.slane %v507, %v538
          %v541 = vadd.f32 %v534, %v539
          %v542 = vpack.c.bf16 %v541, %v541
          %vm543 = vcmask 257024
          %544 = vst.msk [vmem:[#allocation2] sm:$0xf] %vm543, %v542
          %v545 = vld [vmem:[%s4] sm:$0xf]
          %v546 = vld [vmem:[%s4 + $0x4] sm:$0xf]
          %v547 = vld [vmem:[%s4 + $0x8] sm:$0xf]
          %v548 = vld [vmem:[%s4 + $0xc] sm:$0xf]
          %v553 = vunpack.c.l.b16 %v545
          %v554 = vunpack.c.l.b16 %v546
          %v555 = vunpack.c.l.b16 %v547
          %v556 = vunpack.c.l.b16 %v548
          %v557 = vpack.c.b16 %v554, %v553
          %v558 = vpack.c.b16 %v556, %v555
          %v562 = vsel %vm513, %v542, 0
          %564 = vmatprep.subr.bf16.mxu0 0
          %565 = vmatpush1.bf16.msra.mxu0 0
          %566 = vmatprep.subr.bf16.mxu0 0
          %567 = vmatpush1.bf16.msra.mxu0 0
          %568 = vmatprep.subr.bf16.mxu0 0
          %569 = vmatpush1.bf16.msra.mxu0 0
          %570 = vmatprep.subr.bf16.mxu0 0
          %571 = vmatpush1.bf16.msra.mxu0 0
          %572 = vmatprep.subr.bf16.mxu0 0
          %573 = vmatpush1.bf16.msra.mxu0 0
          %574 = vmatprep.subr.bf16.mxu0 0
          %575 = vmatpush1.bf16.msra.mxu0 0
          %576 = vmatprep.subr.bf16.mxu0 0
          %577 = vmatpush1.bf16.msra.mxu0 %v558
          %578 = vmatprep.subr.bf16.mxu0 0
          %579 = vmatpush1.bf16.msra.mxu0 %v557
          %580 = vmatprep.subr.bf16.mxu0 0
          %581 = vmatpush2.bf16.msra.mxu0 0
          %582 = vmatprep.subr.bf16.mxu0 0
          %583 = vmatpush2.bf16.msra.mxu0 0
          %584 = vmatprep.subr.bf16.mxu0 0
          %585 = vmatpush2.bf16.msra.mxu0 0
          %586 = vmatprep.subr.bf16.mxu0 0
          %587 = vmatpush2.bf16.msra.mxu0 0
          %588 = vmatprep.subr.bf16.mxu0 0
          %589 = vmatpush2.bf16.msra.mxu0 0
          %590 = vmatprep.subr.bf16.mxu0 0
          %591 = vmatpush2.bf16.msra.mxu0 0
          %592 = vmatprep.subr.bf16.mxu0 0
          %593 = vmatpush2.bf16.msra.mxu0 0
          %594 = vmatprep.subr.bf16.mxu0 0
          %595 = vmatpush2.bf16.msra.mxu0 0
          %596 = vmatprep.mubr.bf16.mxu0 0
          %597 = vmatmul.mubr.bf16.gmra.mxu0 %v562
          %v598 = vpop.f32.mrf.mxu0
          %v599 = vadd.f32 0.0, %v598
          %v600 = vpop.f32.mrf.mxu0
          %v601 = vpop.f32.mrf.mxu0
          %v602 = vpop.f32.mrf.mxu0
          %603 = vdwg.mxu0
          %v604 = vpack.c.bf16 %v599, %v599
          %605 = vst.msk [vmem:[#allocation3] sm:$0xf] %vm543, %v604
          %v606 = vld [vmem:[%s5] sm:$0xf]
          %v607 = vld [vmem:[%s5 + $0x4] sm:$0xf]
          %v608 = vld [vmem:[%s5 + $0x8] sm:$0xf]
          %v609 = vld [vmem:[%s5 + $0xc] sm:$0xf]
          %v614 = vunpack.c.l.b16 %v606
          %v615 = vunpack.c.l.b16 %v607
          %v616 = vunpack.c.l.b16 %v608
          %v617 = vunpack.c.l.b16 %v609
          %v618 = vpack.c.b16 %v615, %v614
          %v619 = vpack.c.b16 %v617, %v616
          %622 = vmatprep.subr.bf16.mxu0 0
          %623 = vmatpush1.bf16.msra.mxu0 0
          %624 = vmatprep.subr.bf16.mxu0 0
          %625 = vmatpush1.bf16.msra.mxu0 0
          %626 = vmatprep.subr.bf16.mxu0 0
          %627 = vmatpush1.bf16.msra.mxu0 0
          %628 = vmatprep.subr.bf16.mxu0 0
          %629 = vmatpush1.bf16.msra.mxu0 0
          %630 = vmatprep.subr.bf16.mxu0 0
          %631 = vmatpush1.bf16.msra.mxu0 0
          %632 = vmatprep.subr.bf16.mxu0 0
          %633 = vmatpush1.bf16.msra.mxu0 0
          %634 = vmatprep.subr.bf16.mxu0 0
          %635 = vmatpush1.bf16.msra.mxu0 %v619
          %636 = vmatprep.subr.bf16.mxu0 0
          %637 = vmatpush1.bf16.msra.mxu0 %v618
          %638 = vmatprep.subr.bf16.mxu0 0
          %639 = vmatpush2.bf16.msra.mxu0 0
          %640 = vmatprep.subr.bf16.mxu0 0
          %641 = vmatpush2.bf16.msra.mxu0 0
          %642 = vmatprep.subr.bf16.mxu0 0
          %643 = vmatpush2.bf16.msra.mxu0 0
          %644 = vmatprep.subr.bf16.mxu0 0
          %645 = vmatpush2.bf16.msra.mxu0 0
          %646 = vmatprep.subr.bf16.mxu0 0
          %647 = vmatpush2.bf16.msra.mxu0 0
          %648 = vmatprep.subr.bf16.mxu0 0
          %649 = vmatpush2.bf16.msra.mxu0 0
          %650 = vmatprep.subr.bf16.mxu0 0
          %651 = vmatpush2.bf16.msra.mxu0 0
          %652 = vmatprep.subr.bf16.mxu0 0
          %653 = vmatpush2.bf16.msra.mxu0 0
          %654 = vmatprep.mubr.bf16.mxu0 0
          %655 = vmatmul.mubr.bf16.gmra.mxu0 %v562
          %v656 = vpop.f32.mrf.mxu0
          %v657 = vadd.f32 0.0, %v656
          %v658 = vpop.f32.mrf.mxu0
          %v659 = vpop.f32.mrf.mxu0
          %v660 = vpop.f32.mrf.mxu0
          %661 = vdwg.mxu0
          %v662 = vpack.c.bf16 %v657, %v657
          %663 = vst.msk [vmem:[#allocation4] sm:$0xf] %vm543, %v662
        $region88: #{tpu_custom_call.1} parent=75 // pred_fallthru
          _
        %s664 = smul.u32 %s35, 8
        %s665 = scalar_lea.vmem %s504, %s664
        %v666 = vld [vmem:[%s665] sm:$0xff]
        %s667 = sshra.s32 %s664, 3
        %s668 = sand.u32 %s664, 7
        %s669 = smul.addr %s667, 4
        %s670 = scalar_lea.vmem [#allocation2], %s669
        %v671 = vld [vmem:[%s670] sm:$0xf]
        %v672 = vld [vmem:[%s3] sm:$0xf]
        %v673 = vld [vmem:[%s3 + $0x4] sm:$0xf]
        %v674 = vld [vmem:[%s3 + $0x8] sm:$0xf]
        %v675 = vld [vmem:[%s3 + $0xc] sm:$0xf]
        %v680 = vunpack.c.l.b16 %v672
        %v681 = vunpack.c.l.b16 %v673
        %v682 = vunpack.c.l.b16 %v674
        %v683 = vunpack.c.l.b16 %v675
        %v684 = vpack.c.b16 %v681, %v680
        %v685 = vpack.c.b16 %v683, %v682
        %vm688 = vcmask 261120
        %v690 = vsel %vm688, %v671, 0
        %692 = vmatprep.subr.bf16.mxu0 0
        %693 = vmatpush1.bf16.msra.mxu0 0
        %694 = vmatprep.subr.bf16.mxu0 0
        %695 = vmatpush1.bf16.msra.mxu0 0
        %696 = vmatprep.subr.bf16.mxu0 0
        %697 = vmatpush1.bf16.msra.mxu0 0
        %698 = vmatprep.subr.bf16.mxu0 0
        %699 = vmatpush1.bf16.msra.mxu0 0
        %700 = vmatprep.subr.bf16.mxu0 0
        %701 = vmatpush1.bf16.msra.mxu0 0
        %702 = vmatprep.subr.bf16.mxu0 0
        %703 = vmatpush1.bf16.msra.mxu0 0
        %704 = vmatprep.subr.bf16.mxu0 0
        %705 = vmatpush1.bf16.msra.mxu0 %v685
        %706 = vmatprep.subr.bf16.mxu0 0
        %707 = vmatpush1.bf16.msra.mxu0 %v684
        %708 = vmatprep.subr.bf16.mxu0 0
        %709 = vmatpush2.bf16.msra.mxu0 0
        %710 = vmatprep.subr.bf16.mxu0 0
        %711 = vmatpush2.bf16.msra.mxu0 0
        %712 = vmatprep.subr.bf16.mxu0 0
        %713 = vmatpush2.bf16.msra.mxu0 0
        %714 = vmatprep.subr.bf16.mxu0 0
        %715 = vmatpush2.bf16.msra.mxu0 0
        %716 = vmatprep.subr.bf16.mxu0 0
        %717 = vmatpush2.bf16.msra.mxu0 0
        %718 = vmatprep.subr.bf16.mxu0 0
        %719 = vmatpush2.bf16.msra.mxu0 0
        %720 = vmatprep.subr.bf16.mxu0 0
        %721 = vmatpush2.bf16.msra.mxu0 0
        %722 = vmatprep.subr.bf16.mxu0 0
        %723 = vmatpush2.bf16.msra.mxu0 0
        %724 = vmatprep.mubr.bf16.mxu0 0
        %725 = vmatmul.mubr.bf16.gmra.mxu0 %v690
        %v726 = vpop.f32.mrf.mxu0
        %v727 = vadd.f32 0.0, %v726
        %v728 = vpop.f32.mrf.mxu0
        %v729 = vpop.f32.mrf.mxu0
        %v730 = vpop.f32.mrf.mxu0
        %731 = vdwg.mxu0
        %v732 = vmul.f32 %v727, 0.35355338
        %v733 = vpack.c.bf16 %v732, %v732
        %v734 = vld [vmem:[#allocation3] sm:$0xf]
        %v735 = vld [vmem:[#allocation4] sm:$0xf]
        %vm736 = vcmask 64512
        %v738 = vsel %vm736, %v733, 0
        %v741 = vsel %vm736, %v734, 0
        %743 = vmatprep.subr.bf16.mxu0 0
        %744 = vmatpush1.bf16.xpose.msra.mxu0 0
        %745 = vmatprep.subr.bf16.mxu0 0
        %746 = vmatpush1.bf16.xpose.msra.mxu0 0
        %747 = vmatprep.subr.bf16.mxu0 0
        %748 = vmatpush1.bf16.xpose.msra.mxu0 0
        %749 = vmatprep.subr.bf16.mxu0 0
        %750 = vmatpush1.bf16.xpose.msra.mxu0 0
        %751 = vmatprep.subr.bf16.mxu0 0
        %752 = vmatpush1.bf16.xpose.msra.mxu0 0
        %753 = vmatprep.subr.bf16.mxu0 0
        %754 = vmatpush1.bf16.xpose.msra.mxu0 0
        %755 = vmatprep.subr.bf16.mxu0 0
        %756 = vmatpush1.bf16.xpose.msra.mxu0 0
        %757 = vmatprep.subr.bf16.mxu0 0
        %758 = vmatpush1.bf16.xpose.msra.mxu0 %v741
        %759 = vmatprep.subr.bf16.mxu0 0
        %760 = vmatpush2.bf16.xpose.msra.mxu0 0
        %761 = vmatprep.subr.bf16.mxu0 0
        %762 = vmatpush2.bf16.xpose.msra.mxu0 0
        %763 = vmatprep.subr.bf16.mxu0 0
        %764 = vmatpush2.bf16.xpose.msra.mxu0 0
        %765 = vmatprep.subr.bf16.mxu0 0
        %766 = vmatpush2.bf16.xpose.msra.mxu0 0
        %767 = vmatprep.subr.bf16.mxu0 0
        %768 = vmatpush2.bf16.xpose.msra.mxu0 0
        %769 = vmatprep.subr.bf16.mxu0 0
        %770 = vmatpush2.bf16.xpose.msra.mxu0 0
        %771 = vmatprep.subr.bf16.mxu0 0
        %772 = vmatpush2.bf16.xpose.msra.mxu0 0
        %773 = vmatprep.subr.bf16.mxu0 0
        %774 = vmatpush2.bf16.xpose.msra.mxu0 0
        %775 = vmatprep.mubr.bf16.mxu0 0
        %776 = vmatmul.mubr.bf16.gmra.mxu0 %v738
        %v777 = vpop.f32.mrf.mxu0
        %v778 = vadd.f32 0.0, %v777
        %v779 = vpop.f32.mrf.mxu0
        %v780 = vpop.f32.mrf.mxu0
        %v781 = vpop.f32.mrf.mxu0
        %782 = vdwg.mxu0
        %v783 = vsel %vm736, %v778, -inf
        %784 = vmax.xlane.f32.xlu0 %v783
        %v785 = vpop.xlane.xlu0 %784
        %v786 = vsub.f32 %v778, %v785
        %v787 = vmul.f32 %v786, 1.442695
        %v788 = vpow.pop %v787
        %v789 = vsel %vm736, %v788, 0.0
        %790 = vadd.xlane.f32.xlu0 %v789
        %v791 = vpop.xlane.xlu0 %790
        %v792 = vrcp.pop %v791
        %v793 = vmul.f32 %v788, %v792
        %v794 = vpack.c.bf16 %v793, %v793
        %v796 = vsel %vm736, %v794, 0
        %vm798 = vcmask 1043456
        %v800 = vsel %vm798, %v735, 0
        %802 = vmatprep.subr.bf16.mxu0 0
        %803 = vmatpush1.bf16.msra.mxu0 0
        %804 = vmatprep.subr.bf16.mxu0 0
        %805 = vmatpush1.bf16.msra.mxu0 0
        %806 = vmatprep.subr.bf16.mxu0 0
        %807 = vmatpush1.bf16.msra.mxu0 0
        %808 = vmatprep.subr.bf16.mxu0 0
        %809 = vmatpush1.bf16.msra.mxu0 0
        %810 = vmatprep.subr.bf16.mxu0 0
        %811 = vmatpush1.bf16.msra.mxu0 0
        %812 = vmatprep.subr.bf16.mxu0 0
        %813 = vmatpush1.bf16.msra.mxu0 0
        %814 = vmatprep.subr.bf16.mxu0 0
        %815 = vmatpush1.bf16.msra.mxu0 0
        %816 = vmatprep.subr.bf16.mxu0 0
        %817 = vmatpush1.bf16.msra.mxu0 %v800
        %818 = vmatprep.subr.bf16.mxu0 0
        %819 = vmatpush2.bf16.msra.mxu0 0
        %820 = vmatprep.subr.bf16.mxu0 0
        %821 = vmatpush2.bf16.msra.mxu0 0
        %822 = vmatprep.subr.bf16.mxu0 0
        %823 = vmatpush2.bf16.msra.mxu0 0
        %824 = vmatprep.subr.bf16.mxu0 0
        %825 = vmatpush2.bf16.msra.mxu0 0
        %826 = vmatprep.subr.bf16.mxu0 0
        %827 = vmatpush2.bf16.msra.mxu0 0
        %828 = vmatprep.subr.bf16.mxu0 0
        %829 = vmatpush2.bf16.msra.mxu0 0
        %830 = vmatprep.subr.bf16.mxu0 0
        %831 = vmatpush2.bf16.msra.mxu0 0
        %832 = vmatprep.subr.bf16.mxu0 0
        %833 = vmatpush2.bf16.msra.mxu0 0
        %834 = vmatprep.mubr.bf16.mxu0 0
        %835 = vmatmul.mubr.bf16.gmra.mxu0 %v796
        %v836 = vpop.f32.mrf.mxu0
        %v837 = vadd.f32 0.0, %v836
        %v838 = vpop.f32.mrf.mxu0
        %v839 = vpop.f32.mrf.mxu0
        %v840 = vpop.f32.mrf.mxu0
        %841 = vdwg.mxu0
        %v842 = vpack.c.bf16 %v837, %v837
        %vm843 = vcmask 60416
        %844 = vst.msk [vmem:[#allocation5] sm:$0xf] %vm843, %v842
        %846 = vrot.lane.b32.xlu0 %v733, 120
        %v847 = vpop.permute.xlu0 %846
        %v849 = vunpack.c.l.b16 %v734
        %v850 = vpack.c.b16 %v849, %v849
        %851 = vrot.lane.b32.xlu0 %v850, 120
        %v852 = vpop.permute.xlu0 %851
        %v854 = vsel %vm736, %v847, 0
        %v857 = vsel %vm736, %v852, 0
        %859 = vmatprep.subr.bf16.mxu0 0
        %860 = vmatpush1.bf16.xpose.msra.mxu0 0
        %861 = vmatprep.subr.bf16.mxu0 0
        %862 = vmatpush1.bf16.xpose.msra.mxu0 0
        %863 = vmatprep.subr.bf16.mxu0 0
        %864 = vmatpush1.bf16.xpose.msra.mxu0 0
        %865 = vmatprep.subr.bf16.mxu0 0
        %866 = vmatpush1.bf16.xpose.msra.mxu0 0
        %867 = vmatprep.subr.bf16.mxu0 0
        %868 = vmatpush1.bf16.xpose.msra.mxu0 0
        %869 = vmatprep.subr.bf16.mxu0 0
        %870 = vmatpush1.bf16.xpose.msra.mxu0 0
        %871 = vmatprep.subr.bf16.mxu0 0
        %872 = vmatpush1.bf16.xpose.msra.mxu0 0
        %873 = vmatprep.subr.bf16.mxu0 0
        %874 = vmatpush1.bf16.xpose.msra.mxu0 %v857
        %875 = vmatprep.subr.bf16.mxu0 0
        %876 = vmatpush2.bf16.xpose.msra.mxu0 0
        %877 = vmatprep.subr.bf16.mxu0 0
        %878 = vmatpush2.bf16.xpose.msra.mxu0 0
        %879 = vmatprep.subr.bf16.mxu0 0
        %880 = vmatpush2.bf16.xpose.msra.mxu0 0
        %881 = vmatprep.subr.bf16.mxu0 0
        %882 = vmatpush2.bf16.xpose.msra.mxu0 0
        %883 = vmatprep.subr.bf16.mxu0 0
        %884 = vmatpush2.bf16.xpose.msra.mxu0 0
        %885 = vmatprep.subr.bf16.mxu0 0
        %886 = vmatpush2.bf16.xpose.msra.mxu0 0
        %887 = vmatprep.subr.bf16.mxu0 0
        %888 = vmatpush2.bf16.xpose.msra.mxu0 0
        %889 = vmatprep.subr.bf16.mxu0 0
        %890 = vmatpush2.bf16.xpose.msra.mxu0 0
        %891 = vmatprep.mubr.bf16.mxu0 0
        %892 = vmatmul.mubr.bf16.gmra.mxu0 %v854
        %v893 = vpop.f32.mrf.mxu0
        %v894 = vadd.f32 0.0, %v893
        %v895 = vpop.f32.mrf.mxu0
        %v896 = vpop.f32.mrf.mxu0
        %v897 = vpop.f32.mrf.mxu0
        %898 = vdwg.mxu0
        %v899 = vsel %vm736, %v894, -inf
        %900 = vmax.xlane.f32.xlu0 %v899
        %v901 = vpop.xlane.xlu0 %900
        %v902 = vsub.f32 %v894, %v901
        %v903 = vmul.f32 %v902, 1.442695
        %v904 = vpow.pop %v903
        %v905 = vsel %vm736, %v904, 0.0
        %906 = vadd.xlane.f32.xlu0 %v905
        %v907 = vpop.xlane.xlu0 %906
        %v908 = vrcp.pop %v907
        %v909 = vmul.f32 %v904, %v908
        %v910 = vpack.c.bf16 %v909, %v909
        %v912 = vunpack.c.l.b16 %v735
        %v913 = vpack.c.b16 %v912, %v912
        %914 = vrot.lane.b32.xlu0 %v913, 120
        %v915 = vpop.permute.xlu0 %914
        %v917 = vsel %vm736, %v910, 0
        %v920 = vsel %vm798, %v915, 0
        %922 = vmatprep.subr.bf16.mxu0 0
        %923 = vmatpush1.bf16.msra.mxu0 0
        %924 = vmatprep.subr.bf16.mxu0 0
        %925 = vmatpush1.bf16.msra.mxu0 0
        %926 = vmatprep.subr.bf16.mxu0 0
        %927 = vmatpush1.bf16.msra.mxu0 0
        %928 = vmatprep.subr.bf16.mxu0 0
        %929 = vmatpush1.bf16.msra.mxu0 0
        %930 = vmatprep.subr.bf16.mxu0 0
        %931 = vmatpush1.bf16.msra.mxu0 0
        %932 = vmatprep.subr.bf16.mxu0 0
        %933 = vmatpush1.bf16.msra.mxu0 0
        %934 = vmatprep.subr.bf16.mxu0 0
        %935 = vmatpush1.bf16.msra.mxu0 0
        %936 = vmatprep.subr.bf16.mxu0 0
        %937 = vmatpush1.bf16.msra.mxu0 %v920
        %938 = vmatprep.subr.bf16.mxu0 0
        %939 = vmatpush2.bf16.msra.mxu0 0
        %940 = vmatprep.subr.bf16.mxu0 0
        %941 = vmatpush2.bf16.msra.mxu0 0
        %942 = vmatprep.subr.bf16.mxu0 0
        %943 = vmatpush2.bf16.msra.mxu0 0
        %944 = vmatprep.subr.bf16.mxu0 0
        %945 = vmatpush2.bf16.msra.mxu0 0
        %946 = vmatprep.subr.bf16.mxu0 0
        %947 = vmatpush2.bf16.msra.mxu0 0
        %948 = vmatprep.subr.bf16.mxu0 0
        %949 = vmatpush2.bf16.msra.mxu0 0
        %950 = vmatprep.subr.bf16.mxu0 0
        %951 = vmatpush2.bf16.msra.mxu0 0
        %952 = vmatprep.subr.bf16.mxu0 0
        %953 = vmatpush2.bf16.msra.mxu0 0
        %954 = vmatprep.mubr.bf16.mxu0 0
        %955 = vmatmul.mubr.bf16.gmra.mxu0 %v917
        %v956 = vpop.f32.mrf.mxu0
        %v957 = vadd.f32 0.0, %v956
        %v958 = vpop.f32.mrf.mxu0
        %v959 = vpop.f32.mrf.mxu0
        %v960 = vpop.f32.mrf.mxu0
        %961 = vdwg.mxu0
        %v962 = vpack.c.bf16 %v957, %v957
        %v964 = vunpack.c.l.b16 %v962
        %v965 = vpack.c.b16 %v964, %v964
        %966 = vrot.lane.b32.xlu0 %v965, 8
        %v967 = vpop.permute.xlu0 %966
        %vm969 = vcmask 126016
        %970 = vst.msk [vmem:[#allocation5] sm:$0xf] %vm969, %v967
        %971 = vrot.lane.b32.xlu0 %v733, 112
        %v972 = vpop.permute.xlu0 %971
        %973 = vrot.lane.b32.xlu0 %v850, 112
        %v974 = vpop.permute.xlu0 %973
        %v976 = vsel %vm736, %v972, 0
        %v979 = vsel %vm736, %v974, 0
        %981 = vmatprep.subr.bf16.mxu0 0
        %982 = vmatpush1.bf16.xpose.msra.mxu0 0
        %983 = vmatprep.subr.bf16.mxu0 0
        %984 = vmatpush1.bf16.xpose.msra.mxu0 0
        %985 = vmatprep.subr.bf16.mxu0 0
        %986 = vmatpush1.bf16.xpose.msra.mxu0 0
        %987 = vmatprep.subr.bf16.mxu0 0
        %988 = vmatpush1.bf16.xpose.msra.mxu0 0
        %989 = vmatprep.subr.bf16.mxu0 0
        %990 = vmatpush1.bf16.xpose.msra.mxu0 0
        %991 = vmatprep.subr.bf16.mxu0 0
        %992 = vmatpush1.bf16.xpose.msra.mxu0 0
        %993 = vmatprep.subr.bf16.mxu0 0
        %994 = vmatpush1.bf16.xpose.msra.mxu0 0
        %995 = vmatprep.subr.bf16.mxu0 0
        %996 = vmatpush1.bf16.xpose.msra.mxu0 %v979
        %997 = vmatprep.subr.bf16.mxu0 0
        %998 = vmatpush2.bf16.xpose.msra.mxu0 0
        %999 = vmatprep.subr.bf16.mxu0 0
        %1000 = vmatpush2.bf16.xpose.msra.mxu0 0
        %1001 = vmatprep.subr.bf16.mxu0 0
        %1002 = vmatpush2.bf16.xpose.msra.mxu0 0
        %1003 = vmatprep.subr.bf16.mxu0 0
        %1004 = vmatpush2.bf16.xpose.msra.mxu0 0
        %1005 = vmatprep.subr.bf16.mxu0 0
        %1006 = vmatpush2.bf16.xpose.msra.mxu0 0
        %1007 = vmatprep.subr.bf16.mxu0 0
        %1008 = vmatpush2.bf16.xpose.msra.mxu0 0
        %1009 = vmatprep.subr.bf16.mxu0 0
        %1010 = vmatpush2.bf16.xpose.msra.mxu0 0
        %1011 = vmatprep.subr.bf16.mxu0 0
        %1012 = vmatpush2.bf16.xpose.msra.mxu0 0
        %1013 = vmatprep.mubr.bf16.mxu0 0
        %1014 = vmatmul.mubr.bf16.gmra.mxu0 %v976
        %v1015 = vpop.f32.mrf.mxu0
        %v1016 = vadd.f32 0.0, %v1015
        %v1017 = vpop.f32.mrf.mxu0
        %v1018 = vpop.f32.mrf.mxu0
        %v1019 = vpop.f32.mrf.mxu0
        %1020 = vdwg.mxu0
        %v1021 = vsel %vm736, %v1016, -inf
        %1022 = vmax.xlane.f32.xlu0 %v1021
        %v1023 = vpop.xlane.xlu0 %1022
        %v1024 = vsub.f32 %v1016, %v1023
        %v1025 = vmul.f32 %v1024, 1.442695
        %v1026 = vpow.pop %v1025
        %v1027 = vsel %vm736, %v1026, 0.0
        %1028 = vadd.xlane.f32.xlu0 %v1027
        %v1029 = vpop.xlane.xlu0 %1028
        %v1030 = vrcp.pop %v1029
        %v1031 = vmul.f32 %v1026, %v1030
        %v1032 = vpack.c.bf16 %v1031, %v1031
        %1033 = vrot.lane.b32.xlu0 %v913, 112
        %v1034 = vpop.permute.xlu0 %1033
        %v1036 = vsel %vm736, %v1032, 0
        %v1039 = vsel %vm798, %v1034, 0
        %1041 = vmatprep.subr.bf16.mxu0 0
        %1042 = vmatpush1.bf16.msra.mxu0 0
        %1043 = vmatprep.subr.bf16.mxu0 0
        %1044 = vmatpush1.bf16.msra.mxu0 0
        %1045 = vmatprep.subr.bf16.mxu0 0
        %1046 = vmatpush1.bf16.msra.mxu0 0
        %1047 = vmatprep.subr.bf16.mxu0 0
        %1048 = vmatpush1.bf16.msra.mxu0 0
        %1049 = vmatprep.subr.bf16.mxu0 0
        %1050 = vmatpush1.bf16.msra.mxu0 0
        %1051 = vmatprep.subr.bf16.mxu0 0
        %1052 = vmatpush1.bf16.msra.mxu0 0
        %1053 = vmatprep.subr.bf16.mxu0 0
        %1054 = vmatpush1.bf16.msra.mxu0 0
        %1055 = vmatprep.subr.bf16.mxu0 0
        %1056 = vmatpush1.bf16.msra.mxu0 %v1039
        %1057 = vmatprep.subr.bf16.mxu0 0
        %1058 = vmatpush2.bf16.msra.mxu0 0
        %1059 = vmatprep.subr.bf16.mxu0 0
        %1060 = vmatpush2.bf16.msra.mxu0 0
        %1061 = vmatprep.subr.bf16.mxu0 0
        %1062 = vmatpush2.bf16.msra.mxu0 0
        %1063 = vmatprep.subr.bf16.mxu0 0
        %1064 = vmatpush2.bf16.msra.mxu0 0
        %1065 = vmatprep.subr.bf16.mxu0 0
        %1066 = vmatpush2.bf16.msra.mxu0 0
        %1067 = vmatprep.subr.bf16.mxu0 0
        %1068 = vmatpush2.bf16.msra.mxu0 0
        %1069 = vmatprep.subr.bf16.mxu0 0
        %1070 = vmatpush2.bf16.msra.mxu0 0
        %1071 = vmatprep.subr.bf16.mxu0 0
        %1072 = vmatpush2.bf16.msra.mxu0 0
        %1073 = vmatprep.mubr.bf16.mxu0 0
        %1074 = vmatmul.mubr.bf16.gmra.mxu0 %v1036
        %v1075 = vpop.f32.mrf.mxu0
        %v1076 = vadd.f32 0.0, %v1075
        %v1077 = vpop.f32.mrf.mxu0
        %v1078 = vpop.f32.mrf.mxu0
        %v1079 = vpop.f32.mrf.mxu0
        %1080 = vdwg.mxu0
        %v1081 = vpack.c.bf16 %v1076, %v1076
        %v1083 = vunpack.c.l.b16 %v1081
        %v1084 = vpack.c.b16 %v1083, %v1083
        %1085 = vrot.lane.b32.xlu0 %v1084, 16
        %v1086 = vpop.permute.xlu0 %1085
        %vm1088 = vcmask 191616
        %1089 = vst.msk [vmem:[#allocation5] sm:$0xf] %vm1088, %v1086
        %1090 = vrot.lane.b32.xlu0 %v733, 104
        %v1091 = vpop.permute.xlu0 %1090
        %1092 = vrot.lane.b32.xlu0 %v850, 104
        %v1093 = vpop.permute.xlu0 %1092
        %v1095 = vsel %vm736, %v1091, 0
        %v1098 = vsel %vm736, %v1093, 0
        %1100 = vmatprep.subr.bf16.mxu0 0
        %1101 = vmatpush1.bf16.xpose.msra.mxu0 0
        %1102 = vmatprep.subr.bf16.mxu0 0
        %1103 = vmatpush1.bf16.xpose.msra.mxu0 0
        %1104 = vmatprep.subr.bf16.mxu0 0
        %1105 = vmatpush1.bf16.xpose.msra.mxu0 0
        %1106 = vmatprep.subr.bf16.mxu0 0
        %1107 = vmatpush1.bf16.xpose.msra.mxu0 0
        %1108 = vmatprep.subr.bf16.mxu0 0
        %1109 = vmatpush1.bf16.xpose.msra.mxu0 0
        %1110 = vmatprep.subr.bf16.mxu0 0
        %1111 = vmatpush1.bf16.xpose.msra.mxu0 0
        %1112 = vmatprep.subr.bf16.mxu0 0
        %1113 = vmatpush1.bf16.xpose.msra.mxu0 0
        %1114 = vmatprep.subr.bf16.mxu0 0
        %1115 = vmatpush1.bf16.xpose.msra.mxu0 %v1098
        %1116 = vmatprep.subr.bf16.mxu0 0
        %1117 = vmatpush2.bf16.xpose.msra.mxu0 0
        %1118 = vmatprep.subr.bf16.mxu0 0
        %1119 = vmatpush2.bf16.xpose.msra.mxu0 0
        %1120 = vmatprep.subr.bf16.mxu0 0
        %1121 = vmatpush2.bf16.xpose.msra.mxu0 0
        %1122 = vmatprep.subr.bf16.mxu0 0
        %1123 = vmatpush2.bf16.xpose.msra.mxu0 0
        %1124 = vmatprep.subr.bf16.mxu0 0
        %1125 = vmatpush2.bf16.xpose.msra.mxu0 0
        %1126 = vmatprep.subr.bf16.mxu0 0
        %1127 = vmatpush2.bf16.xpose.msra.mxu0 0
        %1128 = vmatprep.subr.bf16.mxu0 0
        %1129 = vmatpush2.bf16.xpose.msra.mxu0 0
        %1130 = vmatprep.subr.bf16.mxu0 0
        %1131 = vmatpush2.bf16.xpose.msra.mxu0 0
        %1132 = vmatprep.mubr.bf16.mxu0 0
        %1133 = vmatmul.mubr.bf16.gmra.mxu0 %v1095
        %v1134 = vpop.f32.mrf.mxu0
        %v1135 = vadd.f32 0.0, %v1134
        %v1136 = vpop.f32.mrf.mxu0
        %v1137 = vpop.f32.mrf.mxu0
        %v1138 = vpop.f32.mrf.mxu0
        %1139 = vdwg.mxu0
        %v1140 = vsel %vm736, %v1135, -inf
        %1141 = vmax.xlane.f32.xlu0 %v1140
        %v1142 = vpop.xlane.xlu0 %1141
        %v1143 = vsub.f32 %v1135, %v1142
        %v1144 = vmul.f32 %v1143, 1.442695
        %v1145 = vpow.pop %v1144
        %v1146 = vsel %vm736, %v1145, 0.0
        %1147 = vadd.xlane.f32.xlu0 %v1146
        %v1148 = vpop.xlane.xlu0 %1147
        %v1149 = vrcp.pop %v1148
        %v1150 = vmul.f32 %v1145, %v1149
        %v1151 = vpack.c.bf16 %v1150, %v1150
        %1152 = vrot.lane.b32.xlu0 %v913, 104
        %v1153 = vpop.permute.xlu0 %1152
        %v1155 = vsel %vm736, %v1151, 0
        %v1158 = vsel %vm798, %v1153, 0
        %1160 = vmatprep.subr.bf16.mxu0 0
        %1161 = vmatpush1.bf16.msra.mxu0 0
        %1162 = vmatprep.subr.bf16.mxu0 0
        %1163 = vmatpush1.bf16.msra.mxu0 0
        %1164 = vmatprep.subr.bf16.mxu0 0
        %1165 = vmatpush1.bf16.msra.mxu0 0
        %1166 = vmatprep.subr.bf16.mxu0 0
        %1167 = vmatpush1.bf16.msra.mxu0 0
        %1168 = vmatprep.subr.bf16.mxu0 0
        %1169 = vmatpush1.bf16.msra.mxu0 0
        %1170 = vmatprep.subr.bf16.mxu0 0
        %1171 = vmatpush1.bf16.msra.mxu0 0
        %1172 = vmatprep.subr.bf16.mxu0 0
        %1173 = vmatpush1.bf16.msra.mxu0 0
        %1174 = vmatprep.subr.bf16.mxu0 0
        %1175 = vmatpush1.bf16.msra.mxu0 %v1158
        %1176 = vmatprep.subr.bf16.mxu0 0
        %1177 = vmatpush2.bf16.msra.mxu0 0
        %1178 = vmatprep.subr.bf16.mxu0 0
        %1179 = vmatpush2.bf16.msra.mxu0 0
        %1180 = vmatprep.subr.bf16.mxu0 0
        %1181 = vmatpush2.bf16.msra.mxu0 0
        %1182 = vmatprep.subr.bf16.mxu0 0
        %1183 = vmatpush2.bf16.msra.mxu0 0
        %1184 = vmatprep.subr.bf16.mxu0 0
        %1185 = vmatpush2.bf16.msra.mxu0 0
        %1186 = vmatprep.subr.bf16.mxu0 0
        %1187 = vmatpush2.bf16.msra.mxu0 0
        %1188 = vmatprep.subr.bf16.mxu0 0
        %1189 = vmatpush2.bf16.msra.mxu0 0
        %1190 = vmatprep.subr.bf16.mxu0 0
        %1191 = vmatpush2.bf16.msra.mxu0 0
        %1192 = vmatprep.mubr.bf16.mxu0 0
        %1193 = vmatmul.mubr.bf16.gmra.mxu0 %v1155
        %v1194 = vpop.f32.mrf.mxu0
        %v1195 = vadd.f32 0.0, %v1194
        %v1196 = vpop.f32.mrf.mxu0
        %v1197 = vpop.f32.mrf.mxu0
        %v1198 = vpop.f32.mrf.mxu0
        %1199 = vdwg.mxu0
        %v1200 = vpack.c.bf16 %v1195, %v1195
        %v1202 = vunpack.c.l.b16 %v1200
        %v1203 = vpack.c.b16 %v1202, %v1202
        %1204 = vrot.lane.b32.xlu0 %v1203, 24
        %v1205 = vpop.permute.xlu0 %1204
        %vm1207 = vcmask 257216
        %1208 = vst.msk [vmem:[#allocation5] sm:$0xf] %vm1207, %v1205
        %v1209 = vld [vmem:[#allocation5] sm:$0xf]
        %v1210 = vld [vmem:[%s6] sm:$0xf]
        %v1211 = vld [vmem:[%s6 + $0x4] sm:$0xf]
        %v1212 = vld [vmem:[%s6 + $0x8] sm:$0xf]
        %v1213 = vld [vmem:[%s6 + $0xc] sm:$0xf]
        %v1214 = vld [vmem:[%s7] sm:$0x1]
        %v1216 = vlaneseq
        %v1217 = vshrl.u32 %v1216, 7
        %v1218 = vsub.s32 0, %v1217
        %v1219 = vrot.slane %v1214, %v1218
        %v1225 = vunpack.c.l.b16 %v1210
        %v1226 = vunpack.c.l.b16 %v1211
        %v1227 = vunpack.c.l.b16 %v1212
        %v1228 = vunpack.c.l.b16 %v1213
        %v1229 = vpack.c.b16 %v1226, %v1225
        %v1230 = vpack.c.b16 %v1228, %v1227
        %v1234 = vsel %vm688, %v1209, 0
        %1236 = vmatprep.subr.bf16.mxu0 0
        %1237 = vmatpush1.bf16.msra.mxu0 0
        %1238 = vmatprep.subr.bf16.mxu0 0
        %1239 = vmatpush1.bf16.msra.mxu0 0
        %1240 = vmatprep.subr.bf16.mxu0 0
        %1241 = vmatpush1.bf16.msra.mxu0 0
        %1242 = vmatprep.subr.bf16.mxu0 0
        %1243 = vmatpush1.bf16.msra.mxu0 0
        %1244 = vmatprep.subr.bf16.mxu0 0
        %1245 = vmatpush1.bf16.msra.mxu0 0
        %1246 = vmatprep.subr.bf16.mxu0 0
        %1247 = vmatpush1.bf16.msra.mxu0 0
        %1248 = vmatprep.subr.bf16.mxu0 0
        %1249 = vmatpush1.bf16.msra.mxu0 %v1230
        %1250 = vmatprep.subr.bf16.mxu0 0
        %1251 = vmatpush1.bf16.msra.mxu0 %v1229
        %1252 = vmatprep.subr.bf16.mxu0 0
        %1253 = vmatpush2.bf16.msra.mxu0 0
        %1254 = vmatprep.subr.bf16.mxu0 0
        %1255 = vmatpush2.bf16.msra.mxu0 0
        %1256 = vmatprep.subr.bf16.mxu0 0
        %1257 = vmatpush2.bf16.msra.mxu0 0
        %1258 = vmatprep.subr.bf16.mxu0 0
        %1259 = vmatpush2.bf16.msra.mxu0 0
        %1260 = vmatprep.subr.bf16.mxu0 0
        %1261 = vmatpush2.bf16.msra.mxu0 0
        %1262 = vmatprep.subr.bf16.mxu0 0
        %1263 = vmatpush2.bf16.msra.mxu0 0
        %1264 = vmatprep.subr.bf16.mxu0 0
        %1265 = vmatpush2.bf16.msra.mxu0 0
        %1266 = vmatprep.subr.bf16.mxu0 0
        %1267 = vmatpush2.bf16.msra.mxu0 0
        %1268 = vmatprep.mubr.bf16.mxu0 0
        %1269 = vmatmul.mubr.bf16.gmra.mxu0 %v1234
        %v1270 = vpop.f32.mrf.mxu0
        %v1271 = vadd.f32 %v1219, %v1270
        %v1272 = vpop.f32.mrf.mxu0
        %v1273 = vpop.f32.mrf.mxu0
        %v1274 = vpop.f32.mrf.mxu0
        %1275 = vdwg.mxu0
        %v1276 = vadd.f32 %v666, %v1271
        %v1277 = vld [vmem:[%s8] sm:$0x1]
        %v1278 = vld [vmem:[%s9] sm:$0x1]
        %v1279 = vsel %vm688, %v1276, 0.0
        %1280 = vadd.xlane.f32.xlu0 %v1279
        %v1281 = vpop.xlane.xlu0 %1280
        %v1282 = vrcp.pop 32.0
        %v1283 = vmul.f32 %v1281, %v1282
        %v1284 = vsub.f32 %v1276, %v1283
        %v1285 = vmul.f32 %v1284, %v1284
        %v1286 = vsel %vm688, %v1285, 0.0
        %1287 = vadd.xlane.f32.xlu0 %v1286
        %v1288 = vpop.xlane.xlu0 %1287
        %v1289 = vmul.f32 %v1288, %v1282
        %v1290 = vadd.f32 %v1289, 1e-05
        %v1291 = vrsqrt.pop %v1290
        %v1292 = vmul.f32 %v1284, %v1291
        %v1294 = vlaneseq
        %v1295 = vshrl.u32 %v1294, 7
        %v1296 = vsub.s32 0, %v1295
        %v1297 = vrot.slane %v1277, %v1296
        %v1299 = vmul.f32 %v1292, %v1297
        %v1301 = vlaneseq
        %v1302 = vshrl.u32 %v1301, 7
        %v1303 = vsub.s32 0, %v1302
        %v1304 = vrot.slane %v1278, %v1303
        %v1306 = vadd.f32 %v1299, %v1304
        %v1307 = vpack.c.bf16 %v1306, %v1306
        %v1308 = vld [vmem:[#allocation6] sm:$0xf]
        %v1309 = vld [vmem:[#allocation6 + $0x4] sm:$0xf]
        %v1310 = vld [vmem:[#allocation6 + $0x8] sm:$0xf]
        %v1311 = vld [vmem:[#allocation6 + $0xc] sm:$0xf]
        %v1312 = vld [vmem:[#allocation9] sm:$0x1]
        %v1314 = vlaneseq
        %v1315 = vshrl.u32 %v1314, 7
        %v1316 = vsub.s32 0, %v1315
        %v1317 = vrot.slane %v1312, %v1316
        %v1323 = vunpack.c.l.b16 %v1308
        %v1324 = vunpack.c.l.b16 %v1309
        %v1325 = vunpack.c.l.b16 %v1310
        %v1326 = vunpack.c.l.b16 %v1311
        %v1327 = vpack.c.b16 %v1324, %v1323
        %v1328 = vpack.c.b16 %v1326, %v1325
        %v1332 = vsel %vm688, %v1307, 0
        %1334 = vmatprep.subr.bf16.mxu0 0
        %1335 = vmatpush1.bf16.msra.mxu0 0
        %1336 = vmatprep.subr.bf16.mxu0 0
        %1337 = vmatpush1.bf16.msra.mxu0 0
        %1338 = vmatprep.subr.bf16.mxu0 0
        %1339 = vmatpush1.bf16.msra.mxu0 0
        %1340 = vmatprep.subr.bf16.mxu0 0
        %1341 = vmatpush1.bf16.msra.mxu0 0
        %1342 = vmatprep.subr.bf16.mxu0 0
        %1343 = vmatpush1.bf16.msra.mxu0 0
        %1344 = vmatprep.subr.bf16.mxu0 0
        %1345 = vmatpush1.bf16.msra.mxu0 0
        %1346 = vmatprep.subr.bf16.mxu0 0
        %1347 = vmatpush1.bf16.msra.mxu0 %v1328
        %1348 = vmatprep.subr.bf16.mxu0 0
        %1349 = vmatpush1.bf16.msra.mxu0 %v1327
        %1350 = vmatprep.subr.bf16.mxu0 0
        %1351 = vmatpush2.bf16.msra.mxu0 0
        %1352 = vmatprep.subr.bf16.mxu0 0
        %1353 = vmatpush2.bf16.msra.mxu0 0
        %1354 = vmatprep.subr.bf16.mxu0 0
        %1355 = vmatpush2.bf16.msra.mxu0 0
        %1356 = vmatprep.subr.bf16.mxu0 0
        %1357 = vmatpush2.bf16.msra.mxu0 0
        %1358 = vmatprep.subr.bf16.mxu0 0
        %1359 = vmatpush2.bf16.msra.mxu0 0
        %1360 = vmatprep.subr.bf16.mxu0 0
        %1361 = vmatpush2.bf16.msra.mxu0 0
        %1362 = vmatprep.subr.bf16.mxu0 0
        %1363 = vmatpush2.bf16.msra.mxu0 0
        %1364 = vmatprep.subr.bf16.mxu0 0
        %1365 = vmatpush2.bf16.msra.mxu0 0
        %1366 = vmatprep.mubr.bf16.mxu0 0
        %1367 = vmatmul.mubr.bf16.gmra.mxu0 %v1332
        %v1368 = vpop.f32.mrf.mxu0
        %v1369 = vadd.f32 %v1317, %v1368
        %v1370 = vpop.f32.mrf.mxu0
        %v1371 = vpop.f32.mrf.mxu0
        %v1372 = vpop.f32.mrf.mxu0
        %1373 = vdwg.mxu0
        %v1374 = vmul.f32 %v1369, 0.5
        %v1375 = vmul.f32 %v1369, 0.70710677
        %v1376 = verf.f32.pop %v1375
        %v1377 = vadd.f32 %v1376, 1.0
        %v1378 = vmul.f32 %v1374, %v1377
        %v1379 = vpack.c.bf16 %v1378, %v1378
        %v1380 = vld [vmem:[%s12] sm:$0xf]
        %v1381 = vld [vmem:[%s12 + $0x4] sm:$0xf]
        %v1382 = vld [vmem:[%s12 + $0x8] sm:$0xf]
        %v1383 = vld [vmem:[%s12 + $0xc] sm:$0xf]
        %v1384 = vld [vmem:[%s12 + $0x10] sm:$0xf]
        %v1385 = vld [vmem:[%s12 + $0x14] sm:$0xf]
        %v1386 = vld [vmem:[%s12 + $0x18] sm:$0xf]
        %v1387 = vld [vmem:[%s12 + $0x1c] sm:$0xf]
        %v1388 = vld [vmem:[%s12 + $0x20] sm:$0xf]
        %v1389 = vld [vmem:[%s12 + $0x24] sm:$0xf]
        %v1390 = vld [vmem:[%s12 + $0x28] sm:$0xf]
        %v1391 = vld [vmem:[%s12 + $0x2c] sm:$0xf]
        %v1392 = vld [vmem:[%s12 + $0x30] sm:$0xf]
        %v1393 = vld [vmem:[%s12 + $0x34] sm:$0xf]
        %v1394 = vld [vmem:[%s12 + $0x38] sm:$0xf]
        %v1395 = vld [vmem:[%s12 + $0x3c] sm:$0xf]
        %v1412 = vunpack.c.l.b16 %v1380
        %v1413 = vunpack.c.l.b16 %v1381
        %v1414 = vunpack.c.l.b16 %v1382
        %v1415 = vunpack.c.l.b16 %v1383
        %v1416 = vunpack.c.l.b16 %v1384
        %v1417 = vunpack.c.l.b16 %v1385
        %v1418 = vunpack.c.l.b16 %v1386
        %v1419 = vunpack.c.l.b16 %v1387
        %v1420 = vunpack.c.l.b16 %v1388
        %v1421 = vunpack.c.l.b16 %v1389
        %v1422 = vunpack.c.l.b16 %v1390
        %v1423 = vunpack.c.l.b16 %v1391
        %v1424 = vunpack.c.l.b16 %v1392
        %v1425 = vunpack.c.l.b16 %v1393
        %v1426 = vunpack.c.l.b16 %v1394
        %v1427 = vunpack.c.l.b16 %v1395
        %v1428 = vpack.c.b16 %v1413, %v1412
        %v1429 = vpack.c.b16 %v1415, %v1414
        %v1430 = vpack.c.b16 %v1417, %v1416
        %v1431 = vpack.c.b16 %v1419, %v1418
        %v1432 = vpack.c.b16 %v1421, %v1420
        %v1433 = vpack.c.b16 %v1423, %v1422
        %v1434 = vpack.c.b16 %v1425, %v1424
        %v1435 = vpack.c.b16 %v1427, %v1426
        %1444 = vmatprep.subr.bf16.mxu0 0
        %1445 = vmatpush1.bf16.msra.mxu0 %v1435
        %1446 = vmatprep.subr.bf16.mxu0 0
        %1447 = vmatpush1.bf16.msra.mxu0 %v1434
        %1448 = vmatprep.subr.bf16.mxu0 0
        %1449 = vmatpush1.bf16.msra.mxu0 %v1433
        %1450 = vmatprep.subr.bf16.mxu0 0
        %1451 = vmatpush1.bf16.msra.mxu0 %v1432
        %1452 = vmatprep.subr.bf16.mxu0 0
        %1453 = vmatpush1.bf16.msra.mxu0 %v1431
        %1454 = vmatprep.subr.bf16.mxu0 0
        %1455 = vmatpush1.bf16.msra.mxu0 %v1430
        %1456 = vmatprep.subr.bf16.mxu0 0
        %1457 = vmatpush1.bf16.msra.mxu0 %v1429
        %1458 = vmatprep.subr.bf16.mxu0 0
        %1459 = vmatpush1.bf16.msra.mxu0 %v1428
        %1460 = vmatprep.subr.bf16.mxu0 0
        %1461 = vmatpush2.bf16.msra.mxu0 0
        %1462 = vmatprep.subr.bf16.mxu0 0
        %1463 = vmatpush2.bf16.msra.mxu0 0
        %1464 = vmatprep.subr.bf16.mxu0 0
        %1465 = vmatpush2.bf16.msra.mxu0 0
        %1466 = vmatprep.subr.bf16.mxu0 0
        %1467 = vmatpush2.bf16.msra.mxu0 0
        %1468 = vmatprep.subr.bf16.mxu0 0
        %1469 = vmatpush2.bf16.msra.mxu0 0
        %1470 = vmatprep.subr.bf16.mxu0 0
        %1471 = vmatpush2.bf16.msra.mxu0 0
        %1472 = vmatprep.subr.bf16.mxu0 0
        %1473 = vmatpush2.bf16.msra.mxu0 0
        %1474 = vmatprep.subr.bf16.mxu0 0
        %1475 = vmatpush2.bf16.msra.mxu0 0
        %1476 = vmatprep.mubr.bf16.mxu0 0
        %1477 = vmatmul.mubr.bf16.gmra.mxu0 %v1379
        %v1478 = vpop.f32.mrf.mxu0
        %v1479 = vadd.f32 0.0, %v1478
        %v1480 = vpop.f32.mrf.mxu0
        %v1481 = vpop.f32.mrf.mxu0
        %v1482 = vpop.f32.mrf.mxu0
        %1483 = vdwg.mxu0
        %v1484 = vadd.f32 %v1276, %v1479
        %v1485 = vld [vmem:[%s13] sm:$0x1]
        %v1487 = vlaneseq
        %v1488 = vshrl.u32 %v1487, 7
        %v1489 = vsub.s32 0, %v1488
        %v1490 = vrot.slane %v1485, %v1489
        %v1492 = vadd.f32 %v1484, %v1490
        %1493 = vst.msk [vmem:[%s500] sm:$0xff] %vm688, %v1492
        %s1494 = sand.u32 %s351, 1
        %s1495 = scalar_lea.sflag [#allocation8], %s1494
        %s1496 = sand.u32 %s351, 1
        %s1497 = smul.addr %s1496, 8
        %s1498 = scalar_lea.vmem [#allocation11], %s1497
        // Predicated region
        $region89: #{tpu_custom_call.1} parent=75 // pred_check
          %p1499 = pneg %p361
        $region90: #{tpu_custom_call.1} parent=75 // pred_check_branch
          %1501 = sbr.rel (%p1499) target = $region92
        $region91: #{tpu_custom_call.1} parent=75 // pred_region
          %s1503 = ssub.s32 128, 128
          %1504 = vsyncadd %s1495, %s1503
          %s1505 = sadd.s32 %s35, %s34
          %s1506 = smul.addr %s1505, 128
          %s1507 = scalar_lea.hbm %s14, %s1506
          %s1509 = sshll.u32 %s1498, 4
          %s1510 = int_to_ptr.vmem [resolvable:$true] %s1509
          %1512 = dma.vmem_to_hbm [thread:$0]  %s1510, 128, %s1507, %s1495
        $region92: #{tpu_custom_call.1} parent=75 // pred_fallthru
          _
      $region76: #{tpu_custom_call.1} parent=5 // pred_fallthru
        _
      %p1513 = scmp.le.s32.totalorder 2, %s25
      // Predicated region
      $region93: #{tpu_custom_call.1} parent=5 // pred_check
        %p1514 = pneg %p1513
      $region94: #{tpu_custom_call.1} parent=5 // pred_check_branch
        %1516 = sbr.rel (%p1514) target = $region96
      $region95: #{tpu_custom_call.1} parent=5 // pred_region
        %s1517 = ssub.s32 %s25, 2
        // Predicated region
        $region97: #{tpu_custom_call.1} parent=95 // pred_check
          %p1518 = pneg %p367
        $region98: #{tpu_custom_call.1} parent=95 // pred_check_branch
          %1520 = sbr.rel (%p1518) target = $region100
        $region99: #{tpu_custom_call.1} parent=95 // pred_region
          %s1521 = sand.u32 %s352, 1
          %s1522 = scalar_lea.sflag [#allocation8], %s1521
          %s1523 = sand.u32 %s352, 1
          %s1524 = smul.addr %s1523, 8
          %s1525 = scalar_lea.vmem [#allocation11], %s1524
          %1526 = dma.done %s1522, 128
        $region100: #{tpu_custom_call.1} parent=95 // pred_fallthru
          _
      $region96: #{tpu_custom_call.1} parent=5 // pred_fallthru
        _
    $region6: #{tpu_custom_call.1} parent=1 // loop_footer
      %s29 = sadd.s32 1, %s25
    $region7: #{tpu_custom_call.1} parent=1 // loop_footer_branch
      %24 = sbr.rel target = $region3
    $region8: #{tpu_custom_call.1} parent=1 // loop_exit
      _
    %1527 = vsyncpa [#allocation7], 1
    %s1528 = scalar_lea.sflag [#allocation7], 1
    %1529 = vsyncpa %s1528, 1
    %1530 = vsyncpa [#allocation10], 1
    %1531 = vsyncpa [#allocation8], 1
    %s1532 = scalar_lea.sflag [#allocation8], 1
    %1533 = vsyncpa %s1532, 1

</llo_original>
